<compile_context>
chip_gen: v7x
topology: tpu7x:2x2x1
jax: 0.10.0
libtpu: 0.0.40
codegen_flags: <defaults>
</compile_context>

<pallas_src>
import jax
import jax.numpy as jnp
from jax.experimental import pallas as pl
from jax.experimental.pallas import tpu as pltpu

# ----------------------------- model config -----------------------------
VOCAB = 100
HIDDEN = 32
NHEADS = 2
HEAD_DIM = HIDDEN // NHEADS
INTERMEDIATE = 64
NLAYERS = 2
MAX_POS = 16
LN_EPS = 1e-12

BATCH = 2
SEQ = 8

OUT_ROWS = 8      # sublane-dense output slab
OUT_LANES = 128   # lane-dense output slab


# ----------------------------- fused Pallas kernel -----------------------------
def _bert_fused_kernel(
    x_ref, mask_ref,
    emb_g_ref, emb_b_ref,
    wqkv_ref, bqkv_ref, wo_ref, bo_ref,
    ln1g_ref, ln1b_ref,
    w1_ref, b1_ref, w2_ref, b2_ref,
    ln2g_ref, ln2b_ref,
    poolw_ref, poolb_ref, clsw_ref, clsb_ref,
    o_ref,
):
    B, S, H, NH, D = BATCH, SEQ, HIDDEN, NHEADS, HEAD_DIM
    scale = 1.0 / (D ** 0.5)
    bf16 = jnp.bfloat16

    def ln(h, g, b):
        mu = jnp.mean(h, axis=-1, keepdims=True)
        d = h - mu
        var = jnp.mean(d * d, axis=-1, keepdims=True)
        return d * jax.lax.rsqrt(var + LN_EPS) * g + b

    def gelu(y):
        # TODO(synk): tanh-approximate GELU; PyTorch BERT default is exact erf-GELU.
        return 0.5 * y * (1.0 + jnp.tanh(0.7978845608028654 * (y + 0.044715 * y * y * y)))

    # Embedding LayerNorm (f32 elementwise — safe on v5e where VPU/EUP lack bf16).
    x = ln(x_ref[...], emb_g_ref[...], emb_b_ref[...])            # (B*S, H) f32

    # Additive attention-mask bias, built in-register and hoisted out of all loops.
    bias = (1.0 - mask_ref[...]) * -10000.0                       # (B, S)
    bias3 = jax.lax.broadcast_in_dim(bias, (B, S, S), (0, 2))     # (B, Sq, Sk)

    # Unrolled layer loop; per-layer weights indexed out of stacked VMEM refs.
    for l in range(NLAYERS):
        # Fused QKV projection: one (B*S, H) @ (H, 3H) bf16 MXU matmul, f32 acc.
        qkv = jnp.dot(x.astype(bf16), wqkv_ref[l],
                      preferred_element_type=jnp.float32) + bqkv_ref[l]

        # (B*S, H) -> (B, S, H): pure major-dim split (no data movement).
        q3 = qkv[:, 0:H].reshape(B, S, H)
        k3 = qkv[:, H:2 * H].reshape(B, S, H)
        v3 = qkv[:, 2 * H:3 * H].reshape(B, S, H)

        # Batched attention per head (single leading batch dim -> batched MXU dots).
        head_ctx = []
        for h in range(NH):
            c0, c1 = h * D, (h + 1) * D
            qh = q3[:, :, c0:c1].astype(bf16)
            kh = k3[:, :, c0:c1].astype(bf16)
            vh = v3[:, :, c0:c1].astype(bf16)
            s = jnp.einsum('bqd,bkd->bqk', qh, kh,
                           preferred_element_type=jnp.float32) * scale + bias3
            m = jnp.max(s, axis=-1, keepdims=True)
            p = jnp.exp(s - m)                                    # f32 on EUP
            p = p / jnp.sum(p, axis=-1, keepdims=True)            # exact divide (parity)
            head_ctx.append(jnp.einsum('bqk,bkd->bqd', p.astype(bf16), vh,
                                       preferred_element_type=jnp.float32))
        # One lane concat over heads, then merge major dims back to (B*S, H).
        ctx = jnp.concatenate(head_ctx, axis=-1).reshape(B * S, H)

        attn = jnp.dot(ctx.astype(bf16), wo_ref[l],
                       preferred_element_type=jnp.float32) + bo_ref[l]
        x = ln(attn + x, ln1g_ref[l], ln1b_ref[l])

        h1 = gelu(jnp.dot(x.astype(bf16), w1_ref[l],
                          preferred_element_type=jnp.float32) + b1_ref[l])
        h2 = jnp.dot(h1.astype(bf16), w2_ref[l],
                     preferred_element_type=jnp.float32) + b2_ref[l]
        x = ln(h2 + x, ln2g_ref[l], ln2b_ref[l])

    # CLS-token pick via a tiny iota-built 0/1 selection matmul: avoids sublane
    # gathers/concats in the epilogue.  Rows >= B select nothing (all-zero rows),
    # which pads the pooler/classifier to a full 8-row slab for free.
    row_ids = jax.lax.broadcasted_iota(jnp.int32, (OUT_ROWS, B * S), 0)
    col_ids = jax.lax.broadcasted_iota(jnp.int32, (OUT_ROWS, B * S), 1)
    sel = (col_ids == row_ids * S).astype(jnp.float32)
    cls = jnp.dot(sel, x, preferred_element_type=jnp.float32)     # (8, H)

    pooled = jnp.tanh(jnp.dot(cls.astype(bf16), poolw_ref[...],
                              preferred_element_type=jnp.float32) + poolb_ref[...])
    # (H -> 1) projection as a lane reduction against a row-vector weight.
    logits = jnp.sum(pooled * clsw_ref[...], axis=-1, keepdims=True) + clsb_ref[...]

    # Lane-dense output: broadcast over 128 lanes -> one unmasked full-slab store.
    o_ref[...] = jnp.broadcast_to(logits, (OUT_ROWS, OUT_LANES))


def fused_forward(x_emb, mask, p):
    """x_emb: (B*S, H) f32 embedded inputs; mask: (B, S) f32 mask; p: param dict."""
    inputs = (
        x_emb, mask,
        p["emb_ln_g"], p["emb_ln_b"],
        p["wqkv"], p["bqkv"], p["wo"], p["bo"],
        p["ln1_g"], p["ln1_b"],
        p["w1"], p["b1"], p["w2"], p["b2"],
        p["ln2_g"], p["ln2_b"],
        p["pool_w"], p["pool_b"], p["cls_w_row"], p["cls_b"],
    )
    # No grid: the whole problem (a few hundred KiB) is VMEM-resident, so a 1-step
    # grid would only add per-step bookkeeping.  Whole arrays map to VMEM blocks.
    out = pl.pallas_call(
        _bert_fused_kernel,
        out_shape=jax.ShapeDtypeStruct((OUT_ROWS, OUT_LANES), jnp.float32),
        in_specs=[pl.BlockSpec(memory_space=pltpu.MemorySpace.VMEM) for _ in inputs],
        out_specs=pl.BlockSpec(memory_space=pltpu.MemorySpace.VMEM),
    )(*inputs)
    return out[:BATCH, :1]


# ----------------------------- parameters -----------------------------
def init_params(key):
    keys = iter(jax.random.split(key, 64))

    def dense(shape, scale=0.02):
        return scale * jax.random.normal(next(keys), shape, dtype=jnp.float32)

    p = {
        "word_emb": dense((VOCAB, HIDDEN)),
        "pos_emb": dense((MAX_POS, HIDDEN)),
        "type_emb": dense((2, HIDDEN)),
        "emb_ln_g": jnp.ones((1, HIDDEN), jnp.float32),
        "emb_ln_b": jnp.zeros((1, HIDDEN), jnp.float32),
        # MXU operand weights stored bf16 (halves VMEM/vreg footprint + DMA bytes);
        # f32 accumulation is requested at every dot site.
        "pool_w": dense((HIDDEN, HIDDEN)).astype(jnp.bfloat16),
        "pool_b": jnp.zeros((1, HIDDEN), jnp.float32),
        # Classifier weight kept as a row vector so the H->1 projection is a
        # lane reduction in-kernel (no N=1 matmul / masked-store path).
        "cls_w_row": dense((1, HIDDEN)),
        "cls_b": jnp.zeros((1, 1), jnp.float32),
    }

    wqkv, bqkv, wo, bo = [], [], [], []
    ln1g, ln1b, w1, b1, w2, b2, ln2g, ln2b = [], [], [], [], [], [], [], []
    for _ in range(NLAYERS):
        wq = dense((HIDDEN, HIDDEN))
        wk = dense((HIDDEN, HIDDEN))
        wv = dense((HIDDEN, HIDDEN))
        wqkv.append(jnp.concatenate([wq, wk, wv], axis=1))        # (H, 3H) fused QKV
        bqkv.append(jnp.zeros((1, 3 * HIDDEN), jnp.float32))
        wo.append(dense((HIDDEN, HIDDEN)))
        bo.append(jnp.zeros((1, HIDDEN), jnp.float32))
        ln1g.append(jnp.ones((1, HIDDEN), jnp.float32))
        ln1b.append(jnp.zeros((1, HIDDEN), jnp.float32))
        w1.append(dense((HIDDEN, INTERMEDIATE)))
        b1.append(jnp.zeros((1, INTERMEDIATE), jnp.float32))
        w2.append(dense((INTERMEDIATE, HIDDEN)))
        b2.append(jnp.zeros((1, HIDDEN), jnp.float32))
        ln2g.append(jnp.ones((1, HIDDEN), jnp.float32))
        ln2b.append(jnp.zeros((1, HIDDEN), jnp.float32))

    def stack(xs, dtype=jnp.float32):
        return jnp.stack(xs, axis=0).astype(dtype)

    p.update({
        "wqkv": stack(wqkv, jnp.bfloat16), "bqkv": stack(bqkv),
        "wo": stack(wo, jnp.bfloat16), "bo": stack(bo),
        "ln1_g": stack(ln1g), "ln1_b": stack(ln1b),
        "w1": stack(w1, jnp.bfloat16), "b1": stack(b1),
        "w2": stack(w2, jnp.bfloat16), "b2": stack(b2),
        "ln2_g": stack(ln2g), "ln2_b": stack(ln2b),
    })
    return p


# ----------------------------- forward pass -----------------------------
@jax.jit
def forward(params, input_ids, attention_mask):
    B, S = input_ids.shape
    # Embedding gather + position / token-type(=0) embeddings (JAX glue;
    # data-dependent gather stays outside the single-block kernel).
    # TODO(synk): at scale, move this in-kernel via PrefetchScalarGridSpec with a
    # pl.Element row-gather BlockSpec on word_emb to avoid the HBM round trip.
    x = (
        jnp.take(params["word_emb"], input_ids, axis=0)
        + params["pos_emb"][:S][None, :, :]
        + params["type_emb"][0][None, None, :]
    )
    x = x.reshape(B * S, HIDDEN)
    mask = attention_mask.astype(jnp.float32)
    return fused_forward(x, mask, params)  # (B, 1)


# ----------------------------- main -----------------------------
if __name__ == "__main__":
    key = jax.random.PRNGKey(0)
    k_params, k_ids = jax.random.split(key)

    params = init_params(k_params)

    input_ids = jax.random.randint(k_ids, (BATCH, SEQ), 0, VOCAB, dtype=jnp.int32)
    attention_mask = jnp.ones((BATCH, SEQ), dtype=jnp.int32).at[1, 6:].set(0)

    logits = forward(params, input_ids, attention_mask)
    jax.block_until_ready(logits)
    assert logits.shape == (BATCH, 1) and logits.dtype == jnp.float32
    assert bool(jnp.all(jnp.isfinite(logits)))
    print("KERNEL_OK")
</pallas_src>

<mosaic_0001>
module attributes {stable_mosaic.version = 11 : i64} {
  func.func @_bert_fused_kernel(%arg0: memref<16x32xf32, #tpu.memory_space<vmem>>, %arg1: memref<2x8xf32, #tpu.memory_space<vmem>>, %arg2: memref<1x32xf32, #tpu.memory_space<vmem>>, %arg3: memref<1x32xf32, #tpu.memory_space<vmem>>, %arg4: memref<2x32x96xbf16, #tpu.memory_space<vmem>>, %arg5: memref<2x1x96xf32, #tpu.memory_space<vmem>>, %arg6: memref<2x32x32xbf16, #tpu.memory_space<vmem>>, %arg7: memref<2x1x32xf32, #tpu.memory_space<vmem>>, %arg8: memref<2x1x32xf32, #tpu.memory_space<vmem>>, %arg9: memref<2x1x32xf32, #tpu.memory_space<vmem>>, %arg10: memref<2x32x64xbf16, #tpu.memory_space<vmem>>, %arg11: memref<2x1x64xf32, #tpu.memory_space<vmem>>, %arg12: memref<2x64x32xbf16, #tpu.memory_space<vmem>>, %arg13: memref<2x1x32xf32, #tpu.memory_space<vmem>>, %arg14: memref<2x1x32xf32, #tpu.memory_space<vmem>>, %arg15: memref<2x1x32xf32, #tpu.memory_space<vmem>>, %arg16: memref<32x32xbf16, #tpu.memory_space<vmem>>, %arg17: memref<1x32xf32, #tpu.memory_space<vmem>>, %arg18: memref<1x32xf32, #tpu.memory_space<vmem>>, %arg19: memref<1x1xf32, #tpu.memory_space<vmem>>, %arg20: memref<8x128xf32, #tpu.memory_space<vmem>>) attributes {dimension_semantics = [], scalar_prefetch = 0 : i64, scratch_operands = 0 : i64, tpu.core_type = #tpu.core_type<tc>} {
    %c0 = arith.constant 0 : index
    %c0_0 = arith.constant 0 : index
    %0 = vector.load %arg0[%c0, %c0_0] : memref<16x32xf32, #tpu.memory_space<vmem>>, vector<16x32xf32>
    %c0_1 = arith.constant 0 : index
    %c0_2 = arith.constant 0 : index
    %1 = vector.load %arg2[%c0_1, %c0_2] : memref<1x32xf32, #tpu.memory_space<vmem>>, vector<1x32xf32>
    %c0_3 = arith.constant 0 : index
    %c0_4 = arith.constant 0 : index
    %2 = vector.load %arg3[%c0_3, %c0_4] : memref<1x32xf32, #tpu.memory_space<vmem>>, vector<1x32xf32>
    %cst = arith.constant dense<0.000000e+00> : vector<16xf32>
    %3 = vector.multi_reduction <add>, %0, %cst [1] : vector<16x32xf32> to vector<16xf32>
    %4 = vector.shape_cast %3 : vector<16xf32> to vector<16x1xf32>
    %cst_5 = arith.constant 3.200000e+01 : f32
    %5 = vector.broadcast %cst_5 : f32 to vector<16x1xf32>
    %6 = arith.divf %4, %5 : vector<16x1xf32>
    %7 = vector.broadcast %6 : vector<16x1xf32> to vector<16x32xf32>
    %8 = arith.subf %0, %7 : vector<16x32xf32>
    %9 = arith.mulf %8, %8 : vector<16x32xf32>
    %cst_6 = arith.constant dense<0.000000e+00> : vector<16xf32>
    %10 = vector.multi_reduction <add>, %9, %cst_6 [1] : vector<16x32xf32> to vector<16xf32>
    %11 = vector.shape_cast %10 : vector<16xf32> to vector<16x1xf32>
    %cst_7 = arith.constant 3.200000e+01 : f32
    %12 = vector.broadcast %cst_7 : f32 to vector<16x1xf32>
    %13 = arith.divf %11, %12 : vector<16x1xf32>
    %cst_8 = arith.constant 9.99999996E-13 : f32
    %14 = vector.broadcast %cst_8 : f32 to vector<16x1xf32>
    %15 = arith.addf %13, %14 : vector<16x1xf32>
    %16 = math.rsqrt %15 : vector<16x1xf32>
    %17 = vector.broadcast %16 : vector<16x1xf32> to vector<16x32xf32>
    %18 = arith.mulf %8, %17 : vector<16x32xf32>
    %19 = vector.broadcast %1 : vector<1x32xf32> to vector<16x32xf32>
    %20 = arith.mulf %18, %19 : vector<16x32xf32>
    %21 = vector.broadcast %2 : vector<1x32xf32> to vector<16x32xf32>
    %22 = arith.addf %20, %21 : vector<16x32xf32>
    %c0_9 = arith.constant 0 : index
    %c0_10 = arith.constant 0 : index
    %23 = vector.load %arg1[%c0_9, %c0_10] : memref<2x8xf32, #tpu.memory_space<vmem>>, vector<2x8xf32>
    %cst_11 = arith.constant 1.000000e+00 : f32
    %24 = vector.broadcast %cst_11 : f32 to vector<2x8xf32>
    %25 = arith.subf %24, %23 : vector<2x8xf32>
    %cst_12 = arith.constant -1.000000e+04 : f32
    %26 = vector.broadcast %cst_12 : f32 to vector<2x8xf32>
    %27 = arith.mulf %25, %26 : vector<2x8xf32>
    %28 = vector.shape_cast %27 : vector<2x8xf32> to vector<2x1x8xf32>
    %29 = vector.broadcast %28 : vector<2x1x8xf32> to vector<2x8x8xf32>
    %30 = arith.truncf %22 : vector<16x32xf32> to vector<16x32xbf16>
    %c0_13 = arith.constant 0 : index
    %c0_14 = arith.constant 0 : index
    %c0_15 = arith.constant 0 : index
    %31 = vector.load %arg4[%c0_13, %c0_14, %c0_15] : memref<2x32x96xbf16, #tpu.memory_space<vmem>>, vector<1x32x96xbf16>
    %32 = vector.shape_cast %31 : vector<1x32x96xbf16> to vector<32x96xbf16>
    %cst_16 = arith.constant dense<0.000000e+00> : vector<16x96xf32>
    %33 = tpu.matmul %30, %32, %cst_16 {dimension_numbers = #tpu.dot_dimension_numbers<[1], [0], [0], [1], [0, 0, 1, 1], [], []>} : vector<16x32xbf16>, vector<32x96xbf16>, vector<16x96xf32> -> vector<16x96xf32>
    %c0_17 = arith.constant 0 : index
    %c0_18 = arith.constant 0 : index
    %c0_19 = arith.constant 0 : index
    %34 = vector.load %arg5[%c0_17, %c0_18, %c0_19] : memref<2x1x96xf32, #tpu.memory_space<vmem>>, vector<1x1x96xf32>
    %35 = vector.shape_cast %34 : vector<1x1x96xf32> to vector<1x96xf32>
    %36 = vector.broadcast %35 : vector<1x96xf32> to vector<16x96xf32>
    %37 = arith.addf %33, %36 : vector<16x96xf32>
    %38 = vector.extract_strided_slice %37 {offsets = [0, 0], sizes = [16, 32], strides = [1, 1]} : vector<16x96xf32> to vector<16x32xf32>
    %39 = vector.shape_cast %38 : vector<16x32xf32> to vector<2x8x32xf32>
    %40 = vector.extract_strided_slice %37 {offsets = [0, 32], sizes = [16, 32], strides = [1, 1]} : vector<16x96xf32> to vector<16x32xf32>
    %41 = vector.shape_cast %40 : vector<16x32xf32> to vector<2x8x32xf32>
    %42 = vector.extract_strided_slice %37 {offsets = [0, 64], sizes = [16, 32], strides = [1, 1]} : vector<16x96xf32> to vector<16x32xf32>
    %43 = vector.shape_cast %42 : vector<16x32xf32> to vector<2x8x32xf32>
    %44 = vector.extract_strided_slice %39 {offsets = [0, 0, 0], sizes = [2, 8, 16], strides = [1, 1, 1]} : vector<2x8x32xf32> to vector<2x8x16xf32>
    %45 = arith.truncf %44 : vector<2x8x16xf32> to vector<2x8x16xbf16>
    %46 = vector.extract_strided_slice %41 {offsets = [0, 0, 0], sizes = [2, 8, 16], strides = [1, 1, 1]} : vector<2x8x32xf32> to vector<2x8x16xf32>
    %47 = arith.truncf %46 : vector<2x8x16xf32> to vector<2x8x16xbf16>
    %48 = vector.extract_strided_slice %43 {offsets = [0, 0, 0], sizes = [2, 8, 16], strides = [1, 1, 1]} : vector<2x8x32xf32> to vector<2x8x16xf32>
    %49 = arith.truncf %48 : vector<2x8x16xf32> to vector<2x8x16xbf16>
    "tpu.trace_start"() <{level = 10 : i32, message = "bqd,bkd->bqk"}> : () -> ()
    %cst_20 = arith.constant dense<0.000000e+00> : vector<2x8x8xf32>
    %50 = tpu.matmul %45, %47, %cst_20 {dimension_numbers = #tpu.dot_dimension_numbers<[2], [2], [1], [1], [0, 0, 0, 1, 1, 1], [0], [0]>} : vector<2x8x16xbf16>, vector<2x8x16xbf16>, vector<2x8x8xf32> -> vector<2x8x8xf32>
    "tpu.trace_stop"() : () -> ()
    %cst_21 = arith.constant 2.500000e-01 : f32
    %51 = vector.broadcast %cst_21 : f32 to vector<2x8x8xf32>
    %52 = arith.mulf %50, %51 : vector<2x8x8xf32>
    %53 = arith.addf %52, %29 : vector<2x8x8xf32>
    %cst_22 = arith.constant dense<0xFF800000> : vector<2x8xf32>
    %54 = vector.multi_reduction <maximumf>, %53, %cst_22 [2] : vector<2x8x8xf32> to vector<2x8xf32>
    %55 = vector.shape_cast %54 : vector<2x8xf32> to vector<2x8x1xf32>
    %56 = vector.broadcast %55 : vector<2x8x1xf32> to vector<2x8x8xf32>
    %57 = arith.subf %53, %56 : vector<2x8x8xf32>
    %58 = math.exp %57 : vector<2x8x8xf32>
    %cst_23 = arith.constant dense<0.000000e+00> : vector<2x8xf32>
    %59 = vector.multi_reduction <add>, %58, %cst_23 [2] : vector<2x8x8xf32> to vector<2x8xf32>
    %60 = vector.shape_cast %59 : vector<2x8xf32> to vector<2x8x1xf32>
    %61 = vector.broadcast %60 : vector<2x8x1xf32> to vector<2x8x8xf32>
    %62 = arith.divf %58, %61 : vector<2x8x8xf32>
    %63 = arith.truncf %62 : vector<2x8x8xf32> to vector<2x8x8xbf16>
    "tpu.trace_start"() <{level = 10 : i32, message = "bqk,bkd->bqd"}> : () -> ()
    %cst_24 = arith.constant dense<0.000000e+00> : vector<2x8x16xf32>
    %64 = tpu.matmul %63, %49, %cst_24 {dimension_numbers = #tpu.dot_dimension_numbers<[2], [1], [1], [2], [0, 0, 0, 1, 1, 2], [0], [0]>} : vector<2x8x8xbf16>, vector<2x8x16xbf16>, vector<2x8x16xf32> -> vector<2x8x16xf32>
    "tpu.trace_stop"() : () -> ()
    %65 = vector.extract_strided_slice %39 {offsets = [0, 0, 16], sizes = [2, 8, 16], strides = [1, 1, 1]} : vector<2x8x32xf32> to vector<2x8x16xf32>
    %66 = arith.truncf %65 : vector<2x8x16xf32> to vector<2x8x16xbf16>
    %67 = vector.extract_strided_slice %41 {offsets = [0, 0, 16], sizes = [2, 8, 16], strides = [1, 1, 1]} : vector<2x8x32xf32> to vector<2x8x16xf32>
    %68 = arith.truncf %67 : vector<2x8x16xf32> to vector<2x8x16xbf16>
    %69 = vector.extract_strided_slice %43 {offsets = [0, 0, 16], sizes = [2, 8, 16], strides = [1, 1, 1]} : vector<2x8x32xf32> to vector<2x8x16xf32>
    %70 = arith.truncf %69 : vector<2x8x16xf32> to vector<2x8x16xbf16>
    "tpu.trace_start"() <{level = 10 : i32, message = "bqd,bkd->bqk"}> : () -> ()
    %cst_25 = arith.constant dense<0.000000e+00> : vector<2x8x8xf32>
    %71 = tpu.matmul %66, %68, %cst_25 {dimension_numbers = #tpu.dot_dimension_numbers<[2], [2], [1], [1], [0, 0, 0, 1, 1, 1], [0], [0]>} : vector<2x8x16xbf16>, vector<2x8x16xbf16>, vector<2x8x8xf32> -> vector<2x8x8xf32>
    "tpu.trace_stop"() : () -> ()
    %cst_26 = arith.constant 2.500000e-01 : f32
    %72 = vector.broadcast %cst_26 : f32 to vector<2x8x8xf32>
    %73 = arith.mulf %71, %72 : vector<2x8x8xf32>
    %74 = arith.addf %73, %29 : vector<2x8x8xf32>
    %cst_27 = arith.constant dense<0xFF800000> : vector<2x8xf32>
    %75 = vector.multi_reduction <maximumf>, %74, %cst_27 [2] : vector<2x8x8xf32> to vector<2x8xf32>
    %76 = vector.shape_cast %75 : vector<2x8xf32> to vector<2x8x1xf32>
    %77 = vector.broadcast %76 : vector<2x8x1xf32> to vector<2x8x8xf32>
    %78 = arith.subf %74, %77 : vector<2x8x8xf32>
    %79 = math.exp %78 : vector<2x8x8xf32>
    %cst_28 = arith.constant dense<0.000000e+00> : vector<2x8xf32>
    %80 = vector.multi_reduction <add>, %79, %cst_28 [2] : vector<2x8x8xf32> to vector<2x8xf32>
    %81 = vector.shape_cast %80 : vector<2x8xf32> to vector<2x8x1xf32>
    %82 = vector.broadcast %81 : vector<2x8x1xf32> to vector<2x8x8xf32>
    %83 = arith.divf %79, %82 : vector<2x8x8xf32>
    %84 = arith.truncf %83 : vector<2x8x8xf32> to vector<2x8x8xbf16>
    "tpu.trace_start"() <{level = 10 : i32, message = "bqk,bkd->bqd"}> : () -> ()
    %cst_29 = arith.constant dense<0.000000e+00> : vector<2x8x16xf32>
    %85 = tpu.matmul %84, %70, %cst_29 {dimension_numbers = #tpu.dot_dimension_numbers<[2], [1], [1], [2], [0, 0, 0, 1, 1, 2], [0], [0]>} : vector<2x8x8xbf16>, vector<2x8x16xbf16>, vector<2x8x16xf32> -> vector<2x8x16xf32>
    "tpu.trace_stop"() : () -> ()
    %86 = tpu.concatenate %64, %85 in 2 : vector<2x8x16xf32>, vector<2x8x16xf32> -> vector<2x8x32xf32>
    %87 = vector.shape_cast %86 : vector<2x8x32xf32> to vector<16x32xf32>
    %88 = arith.truncf %87 : vector<16x32xf32> to vector<16x32xbf16>
    %c0_30 = arith.constant 0 : index
    %c0_31 = arith.constant 0 : index
    %c0_32 = arith.constant 0 : index
    %89 = vector.load %arg6[%c0_30, %c0_31, %c0_32] : memref<2x32x32xbf16, #tpu.memory_space<vmem>>, vector<1x32x32xbf16>
    %90 = vector.shape_cast %89 : vector<1x32x32xbf16> to vector<32x32xbf16>
    %cst_33 = arith.constant dense<0.000000e+00> : vector<16x32xf32>
    %91 = tpu.matmul %88, %90, %cst_33 {dimension_numbers = #tpu.dot_dimension_numbers<[1], [0], [0], [1], [0, 0, 1, 1], [], []>} : vector<16x32xbf16>, vector<32x32xbf16>, vector<16x32xf32> -> vector<16x32xf32>
    %c0_34 = arith.constant 0 : index
    %c0_35 = arith.constant 0 : index
    %c0_36 = arith.constant 0 : index
    %92 = vector.load %arg7[%c0_34, %c0_35, %c0_36] : memref<2x1x32xf32, #tpu.memory_space<vmem>>, vector<1x1x32xf32>
    %93 = vector.shape_cast %92 : vector<1x1x32xf32> to vector<1x32xf32>
    %94 = vector.broadcast %93 : vector<1x32xf32> to vector<16x32xf32>
    %95 = arith.addf %91, %94 : vector<16x32xf32>
    %96 = arith.addf %95, %22 : vector<16x32xf32>
    %c0_37 = arith.constant 0 : index
    %c0_38 = arith.constant 0 : index
    %c0_39 = arith.constant 0 : index
    %97 = vector.load %arg8[%c0_37, %c0_38, %c0_39] : memref<2x1x32xf32, #tpu.memory_space<vmem>>, vector<1x1x32xf32>
    %98 = vector.shape_cast %97 : vector<1x1x32xf32> to vector<1x32xf32>
    %c0_40 = arith.constant 0 : index
    %c0_41 = arith.constant 0 : index
    %c0_42 = arith.constant 0 : index
    %99 = vector.load %arg9[%c0_40, %c0_41, %c0_42] : memref<2x1x32xf32, #tpu.memory_space<vmem>>, vector<1x1x32xf32>
    %100 = vector.shape_cast %99 : vector<1x1x32xf32> to vector<1x32xf32>
    %cst_43 = arith.constant dense<0.000000e+00> : vector<16xf32>
    %101 = vector.multi_reduction <add>, %96, %cst_43 [1] : vector<16x32xf32> to vector<16xf32>
    %102 = vector.shape_cast %101 : vector<16xf32> to vector<16x1xf32>
    %cst_44 = arith.constant 3.200000e+01 : f32
    %103 = vector.broadcast %cst_44 : f32 to vector<16x1xf32>
    %104 = arith.divf %102, %103 : vector<16x1xf32>
    %105 = vector.broadcast %104 : vector<16x1xf32> to vector<16x32xf32>
    %106 = arith.subf %96, %105 : vector<16x32xf32>
    %107 = arith.mulf %106, %106 : vector<16x32xf32>
    %cst_45 = arith.constant dense<0.000000e+00> : vector<16xf32>
    %108 = vector.multi_reduction <add>, %107, %cst_45 [1] : vector<16x32xf32> to vector<16xf32>
    %109 = vector.shape_cast %108 : vector<16xf32> to vector<16x1xf32>
    %cst_46 = arith.constant 3.200000e+01 : f32
    %110 = vector.broadcast %cst_46 : f32 to vector<16x1xf32>
    %111 = arith.divf %109, %110 : vector<16x1xf32>
    %cst_47 = arith.constant 9.99999996E-13 : f32
    %112 = vector.broadcast %cst_47 : f32 to vector<16x1xf32>
    %113 = arith.addf %111, %112 : vector<16x1xf32>
    %114 = math.rsqrt %113 : vector<16x1xf32>
    %115 = vector.broadcast %114 : vector<16x1xf32> to vector<16x32xf32>
    %116 = arith.mulf %106, %115 : vector<16x32xf32>
    %117 = vector.broadcast %98 : vector<1x32xf32> to vector<16x32xf32>
    %118 = arith.mulf %116, %117 : vector<16x32xf32>
    %119 = vector.broadcast %100 : vector<1x32xf32> to vector<16x32xf32>
    %120 = arith.addf %118, %119 : vector<16x32xf32>
    %121 = arith.truncf %120 : vector<16x32xf32> to vector<16x32xbf16>
    %c0_48 = arith.constant 0 : index
    %c0_49 = arith.constant 0 : index
    %c0_50 = arith.constant 0 : index
    %122 = vector.load %arg10[%c0_48, %c0_49, %c0_50] : memref<2x32x64xbf16, #tpu.memory_space<vmem>>, vector<1x32x64xbf16>
    %123 = vector.shape_cast %122 : vector<1x32x64xbf16> to vector<32x64xbf16>
    %cst_51 = arith.constant dense<0.000000e+00> : vector<16x64xf32>
    %124 = tpu.matmul %121, %123, %cst_51 {dimension_numbers = #tpu.dot_dimension_numbers<[1], [0], [0], [1], [0, 0, 1, 1], [], []>} : vector<16x32xbf16>, vector<32x64xbf16>, vector<16x64xf32> -> vector<16x64xf32>
    %c0_52 = arith.constant 0 : index
    %c0_53 = arith.constant 0 : index
    %c0_54 = arith.constant 0 : index
    %125 = vector.load %arg11[%c0_52, %c0_53, %c0_54] : memref<2x1x64xf32, #tpu.memory_space<vmem>>, vector<1x1x64xf32>
    %126 = vector.shape_cast %125 : vector<1x1x64xf32> to vector<1x64xf32>
    %127 = vector.broadcast %126 : vector<1x64xf32> to vector<16x64xf32>
    %128 = arith.addf %124, %127 : vector<16x64xf32>
    %cst_55 = arith.constant 5.000000e-01 : f32
    %129 = vector.broadcast %cst_55 : f32 to vector<16x64xf32>
    %130 = arith.mulf %129, %128 : vector<16x64xf32>
    %cst_56 = arith.constant 4.471500e-02 : f32
    %131 = vector.broadcast %cst_56 : f32 to vector<16x64xf32>
    %132 = arith.mulf %131, %128 : vector<16x64xf32>
    %133 = arith.mulf %132, %128 : vector<16x64xf32>
    %134 = arith.mulf %133, %128 : vector<16x64xf32>
    %135 = arith.addf %128, %134 : vector<16x64xf32>
    %cst_57 = arith.constant 0.797884583 : f32
    %136 = vector.broadcast %cst_57 : f32 to vector<16x64xf32>
    %137 = arith.mulf %136, %135 : vector<16x64xf32>
    %138 = math.tanh %137 : vector<16x64xf32>
    %cst_58 = arith.constant 1.000000e+00 : f32
    %139 = vector.broadcast %cst_58 : f32 to vector<16x64xf32>
    %140 = arith.addf %139, %138 : vector<16x64xf32>
    %141 = arith.mulf %130, %140 : vector<16x64xf32>
    %142 = arith.truncf %141 : vector<16x64xf32> to vector<16x64xbf16>
    %c0_59 = arith.constant 0 : index
    %c0_60 = arith.constant 0 : index
    %c0_61 = arith.constant 0 : index
    %143 = vector.load %arg12[%c0_59, %c0_60, %c0_61] : memref<2x64x32xbf16, #tpu.memory_space<vmem>>, vector<1x64x32xbf16>
    %144 = vector.shape_cast %143 : vector<1x64x32xbf16> to vector<64x32xbf16>
    %cst_62 = arith.constant dense<0.000000e+00> : vector<16x32xf32>
    %145 = tpu.matmul %142, %144, %cst_62 {dimension_numbers = #tpu.dot_dimension_numbers<[1], [0], [0], [1], [0, 0, 1, 1], [], []>} : vector<16x64xbf16>, vector<64x32xbf16>, vector<16x32xf32> -> vector<16x32xf32>
    %c0_63 = arith.constant 0 : index
    %c0_64 = arith.constant 0 : index
    %c0_65 = arith.constant 0 : index
    %146 = vector.load %arg13[%c0_63, %c0_64, %c0_65] : memref<2x1x32xf32, #tpu.memory_space<vmem>>, vector<1x1x32xf32>
    %147 = vector.shape_cast %146 : vector<1x1x32xf32> to vector<1x32xf32>
    %148 = vector.broadcast %147 : vector<1x32xf32> to vector<16x32xf32>
    %149 = arith.addf %145, %148 : vector<16x32xf32>
    %150 = arith.addf %149, %120 : vector<16x32xf32>
    %c0_66 = arith.constant 0 : index
    %c0_67 = arith.constant 0 : index
    %c0_68 = arith.constant 0 : index
    %151 = vector.load %arg14[%c0_66, %c0_67, %c0_68] : memref<2x1x32xf32, #tpu.memory_space<vmem>>, vector<1x1x32xf32>
    %152 = vector.shape_cast %151 : vector<1x1x32xf32> to vector<1x32xf32>
    %c0_69 = arith.constant 0 : index
    %c0_70 = arith.constant 0 : index
    %c0_71 = arith.constant 0 : index
    %153 = vector.load %arg15[%c0_69, %c0_70, %c0_71] : memref<2x1x32xf32, #tpu.memory_space<vmem>>, vector<1x1x32xf32>
    %154 = vector.shape_cast %153 : vector<1x1x32xf32> to vector<1x32xf32>
    %cst_72 = arith.constant dense<0.000000e+00> : vector<16xf32>
    %155 = vector.multi_reduction <add>, %150, %cst_72 [1] : vector<16x32xf32> to vector<16xf32>
    %156 = vector.shape_cast %155 : vector<16xf32> to vector<16x1xf32>
    %cst_73 = arith.constant 3.200000e+01 : f32
    %157 = vector.broadcast %cst_73 : f32 to vector<16x1xf32>
    %158 = arith.divf %156, %157 : vector<16x1xf32>
    %159 = vector.broadcast %158 : vector<16x1xf32> to vector<16x32xf32>
    %160 = arith.subf %150, %159 : vector<16x32xf32>
    %161 = arith.mulf %160, %160 : vector<16x32xf32>
    %cst_74 = arith.constant dense<0.000000e+00> : vector<16xf32>
    %162 = vector.multi_reduction <add>, %161, %cst_74 [1] : vector<16x32xf32> to vector<16xf32>
    %163 = vector.shape_cast %162 : vector<16xf32> to vector<16x1xf32>
    %cst_75 = arith.constant 3.200000e+01 : f32
    %164 = vector.broadcast %cst_75 : f32 to vector<16x1xf32>
    %165 = arith.divf %163, %164 : vector<16x1xf32>
    %cst_76 = arith.constant 9.99999996E-13 : f32
    %166 = vector.broadcast %cst_76 : f32 to vector<16x1xf32>
    %167 = arith.addf %165, %166 : vector<16x1xf32>
    %168 = math.rsqrt %167 : vector<16x1xf32>
    %169 = vector.broadcast %168 : vector<16x1xf32> to vector<16x32xf32>
    %170 = arith.mulf %160, %169 : vector<16x32xf32>
    %171 = vector.broadcast %152 : vector<1x32xf32> to vector<16x32xf32>
    %172 = arith.mulf %170, %171 : vector<16x32xf32>
    %173 = vector.broadcast %154 : vector<1x32xf32> to vector<16x32xf32>
    %174 = arith.addf %172, %173 : vector<16x32xf32>
    %175 = arith.truncf %174 : vector<16x32xf32> to vector<16x32xbf16>
    %c1 = arith.constant 1 : index
    %c0_77 = arith.constant 0 : index
    %c0_78 = arith.constant 0 : index
    %176 = vector.load %arg4[%c1, %c0_77, %c0_78] : memref<2x32x96xbf16, #tpu.memory_space<vmem>>, vector<1x32x96xbf16>
    %177 = vector.shape_cast %176 : vector<1x32x96xbf16> to vector<32x96xbf16>
    %cst_79 = arith.constant dense<0.000000e+00> : vector<16x96xf32>
    %178 = tpu.matmul %175, %177, %cst_79 {dimension_numbers = #tpu.dot_dimension_numbers<[1], [0], [0], [1], [0, 0, 1, 1], [], []>} : vector<16x32xbf16>, vector<32x96xbf16>, vector<16x96xf32> -> vector<16x96xf32>
    %c1_80 = arith.constant 1 : index
    %c0_81 = arith.constant 0 : index
    %c0_82 = arith.constant 0 : index
    %179 = vector.load %arg5[%c1_80, %c0_81, %c0_82] : memref<2x1x96xf32, #tpu.memory_space<vmem>>, vector<1x1x96xf32>
    %180 = vector.shape_cast %179 : vector<1x1x96xf32> to vector<1x96xf32>
    %181 = vector.broadcast %180 : vector<1x96xf32> to vector<16x96xf32>
    %182 = arith.addf %178, %181 : vector<16x96xf32>
    %183 = vector.extract_strided_slice %182 {offsets = [0, 0], sizes = [16, 32], strides = [1, 1]} : vector<16x96xf32> to vector<16x32xf32>
    %184 = vector.shape_cast %183 : vector<16x32xf32> to vector<2x8x32xf32>
    %185 = vector.extract_strided_slice %182 {offsets = [0, 32], sizes = [16, 32], strides = [1, 1]} : vector<16x96xf32> to vector<16x32xf32>
    %186 = vector.shape_cast %185 : vector<16x32xf32> to vector<2x8x32xf32>
    %187 = vector.extract_strided_slice %182 {offsets = [0, 64], sizes = [16, 32], strides = [1, 1]} : vector<16x96xf32> to vector<16x32xf32>
    %188 = vector.shape_cast %187 : vector<16x32xf32> to vector<2x8x32xf32>
    %189 = vector.extract_strided_slice %184 {offsets = [0, 0, 0], sizes = [2, 8, 16], strides = [1, 1, 1]} : vector<2x8x32xf32> to vector<2x8x16xf32>
    %190 = arith.truncf %189 : vector<2x8x16xf32> to vector<2x8x16xbf16>
    %191 = vector.extract_strided_slice %186 {offsets = [0, 0, 0], sizes = [2, 8, 16], strides = [1, 1, 1]} : vector<2x8x32xf32> to vector<2x8x16xf32>
    %192 = arith.truncf %191 : vector<2x8x16xf32> to vector<2x8x16xbf16>
    %193 = vector.extract_strided_slice %188 {offsets = [0, 0, 0], sizes = [2, 8, 16], strides = [1, 1, 1]} : vector<2x8x32xf32> to vector<2x8x16xf32>
    %194 = arith.truncf %193 : vector<2x8x16xf32> to vector<2x8x16xbf16>
    "tpu.trace_start"() <{level = 10 : i32, message = "bqd,bkd->bqk"}> : () -> ()
    %cst_83 = arith.constant dense<0.000000e+00> : vector<2x8x8xf32>
    %195 = tpu.matmul %190, %192, %cst_83 {dimension_numbers = #tpu.dot_dimension_numbers<[2], [2], [1], [1], [0, 0, 0, 1, 1, 1], [0], [0]>} : vector<2x8x16xbf16>, vector<2x8x16xbf16>, vector<2x8x8xf32> -> vector<2x8x8xf32>
    "tpu.trace_stop"() : () -> ()
    %cst_84 = arith.constant 2.500000e-01 : f32
    %196 = vector.broadcast %cst_84 : f32 to vector<2x8x8xf32>
    %197 = arith.mulf %195, %196 : vector<2x8x8xf32>
    %198 = arith.addf %197, %29 : vector<2x8x8xf32>
    %cst_85 = arith.constant dense<0xFF800000> : vector<2x8xf32>
    %199 = vector.multi_reduction <maximumf>, %198, %cst_85 [2] : vector<2x8x8xf32> to vector<2x8xf32>
    %200 = vector.shape_cast %199 : vector<2x8xf32> to vector<2x8x1xf32>
    %201 = vector.broadcast %200 : vector<2x8x1xf32> to vector<2x8x8xf32>
    %202 = arith.subf %198, %201 : vector<2x8x8xf32>
    %203 = math.exp %202 : vector<2x8x8xf32>
    %cst_86 = arith.constant dense<0.000000e+00> : vector<2x8xf32>
    %204 = vector.multi_reduction <add>, %203, %cst_86 [2] : vector<2x8x8xf32> to vector<2x8xf32>
    %205 = vector.shape_cast %204 : vector<2x8xf32> to vector<2x8x1xf32>
    %206 = vector.broadcast %205 : vector<2x8x1xf32> to vector<2x8x8xf32>
    %207 = arith.divf %203, %206 : vector<2x8x8xf32>
    %208 = arith.truncf %207 : vector<2x8x8xf32> to vector<2x8x8xbf16>
    "tpu.trace_start"() <{level = 10 : i32, message = "bqk,bkd->bqd"}> : () -> ()
    %cst_87 = arith.constant dense<0.000000e+00> : vector<2x8x16xf32>
    %209 = tpu.matmul %208, %194, %cst_87 {dimension_numbers = #tpu.dot_dimension_numbers<[2], [1], [1], [2], [0, 0, 0, 1, 1, 2], [0], [0]>} : vector<2x8x8xbf16>, vector<2x8x16xbf16>, vector<2x8x16xf32> -> vector<2x8x16xf32>
    "tpu.trace_stop"() : () -> ()
    %210 = vector.extract_strided_slice %184 {offsets = [0, 0, 16], sizes = [2, 8, 16], strides = [1, 1, 1]} : vector<2x8x32xf32> to vector<2x8x16xf32>
    %211 = arith.truncf %210 : vector<2x8x16xf32> to vector<2x8x16xbf16>
    %212 = vector.extract_strided_slice %186 {offsets = [0, 0, 16], sizes = [2, 8, 16], strides = [1, 1, 1]} : vector<2x8x32xf32> to vector<2x8x16xf32>
    %213 = arith.truncf %212 : vector<2x8x16xf32> to vector<2x8x16xbf16>
    %214 = vector.extract_strided_slice %188 {offsets = [0, 0, 16], sizes = [2, 8, 16], strides = [1, 1, 1]} : vector<2x8x32xf32> to vector<2x8x16xf32>
    %215 = arith.truncf %214 : vector<2x8x16xf32> to vector<2x8x16xbf16>
    "tpu.trace_start"() <{level = 10 : i32, message = "bqd,bkd->bqk"}> : () -> ()
    %cst_88 = arith.constant dense<0.000000e+00> : vector<2x8x8xf32>
    %216 = tpu.matmul %211, %213, %cst_88 {dimension_numbers = #tpu.dot_dimension_numbers<[2], [2], [1], [1], [0, 0, 0, 1, 1, 1], [0], [0]>} : vector<2x8x16xbf16>, vector<2x8x16xbf16>, vector<2x8x8xf32> -> vector<2x8x8xf32>
    "tpu.trace_stop"() : () -> ()
    %cst_89 = arith.constant 2.500000e-01 : f32
    %217 = vector.broadcast %cst_89 : f32 to vector<2x8x8xf32>
    %218 = arith.mulf %216, %217 : vector<2x8x8xf32>
    %219 = arith.addf %218, %29 : vector<2x8x8xf32>
    %cst_90 = arith.constant dense<0xFF800000> : vector<2x8xf32>
    %220 = vector.multi_reduction <maximumf>, %219, %cst_90 [2] : vector<2x8x8xf32> to vector<2x8xf32>
    %221 = vector.shape_cast %220 : vector<2x8xf32> to vector<2x8x1xf32>
    %222 = vector.broadcast %221 : vector<2x8x1xf32> to vector<2x8x8xf32>
    %223 = arith.subf %219, %222 : vector<2x8x8xf32>
    %224 = math.exp %223 : vector<2x8x8xf32>
    %cst_91 = arith.constant dense<0.000000e+00> : vector<2x8xf32>
    %225 = vector.multi_reduction <add>, %224, %cst_91 [2] : vector<2x8x8xf32> to vector<2x8xf32>
    %226 = vector.shape_cast %225 : vector<2x8xf32> to vector<2x8x1xf32>
    %227 = vector.broadcast %226 : vector<2x8x1xf32> to vector<2x8x8xf32>
    %228 = arith.divf %224, %227 : vector<2x8x8xf32>
    %229 = arith.truncf %228 : vector<2x8x8xf32> to vector<2x8x8xbf16>
    "tpu.trace_start"() <{level = 10 : i32, message = "bqk,bkd->bqd"}> : () -> ()
    %cst_92 = arith.constant dense<0.000000e+00> : vector<2x8x16xf32>
    %230 = tpu.matmul %229, %215, %cst_92 {dimension_numbers = #tpu.dot_dimension_numbers<[2], [1], [1], [2], [0, 0, 0, 1, 1, 2], [0], [0]>} : vector<2x8x8xbf16>, vector<2x8x16xbf16>, vector<2x8x16xf32> -> vector<2x8x16xf32>
    "tpu.trace_stop"() : () -> ()
    %231 = tpu.concatenate %209, %230 in 2 : vector<2x8x16xf32>, vector<2x8x16xf32> -> vector<2x8x32xf32>
    %232 = vector.shape_cast %231 : vector<2x8x32xf32> to vector<16x32xf32>
    %233 = arith.truncf %232 : vector<16x32xf32> to vector<16x32xbf16>
    %c1_93 = arith.constant 1 : index
    %c0_94 = arith.constant 0 : index
    %c0_95 = arith.constant 0 : index
    %234 = vector.load %arg6[%c1_93, %c0_94, %c0_95] : memref<2x32x32xbf16, #tpu.memory_space<vmem>>, vector<1x32x32xbf16>
    %235 = vector.shape_cast %234 : vector<1x32x32xbf16> to vector<32x32xbf16>
    %cst_96 = arith.constant dense<0.000000e+00> : vector<16x32xf32>
    %236 = tpu.matmul %233, %235, %cst_96 {dimension_numbers = #tpu.dot_dimension_numbers<[1], [0], [0], [1], [0, 0, 1, 1], [], []>} : vector<16x32xbf16>, vector<32x32xbf16>, vector<16x32xf32> -> vector<16x32xf32>
    %c1_97 = arith.constant 1 : index
    %c0_98 = arith.constant 0 : index
    %c0_99 = arith.constant 0 : index
    %237 = vector.load %arg7[%c1_97, %c0_98, %c0_99] : memref<2x1x32xf32, #tpu.memory_space<vmem>>, vector<1x1x32xf32>
    %238 = vector.shape_cast %237 : vector<1x1x32xf32> to vector<1x32xf32>
    %239 = vector.broadcast %238 : vector<1x32xf32> to vector<16x32xf32>
    %240 = arith.addf %236, %239 : vector<16x32xf32>
    %241 = arith.addf %240, %174 : vector<16x32xf32>
    %c1_100 = arith.constant 1 : index
    %c0_101 = arith.constant 0 : index
    %c0_102 = arith.constant 0 : index
    %242 = vector.load %arg8[%c1_100, %c0_101, %c0_102] : memref<2x1x32xf32, #tpu.memory_space<vmem>>, vector<1x1x32xf32>
    %243 = vector.shape_cast %242 : vector<1x1x32xf32> to vector<1x32xf32>
    %c1_103 = arith.constant 1 : index
    %c0_104 = arith.constant 0 : index
    %c0_105 = arith.constant 0 : index
    %244 = vector.load %arg9[%c1_103, %c0_104, %c0_105] : memref<2x1x32xf32, #tpu.memory_space<vmem>>, vector<1x1x32xf32>
    %245 = vector.shape_cast %244 : vector<1x1x32xf32> to vector<1x32xf32>
    %cst_106 = arith.constant dense<0.000000e+00> : vector<16xf32>
    %246 = vector.multi_reduction <add>, %241, %cst_106 [1] : vector<16x32xf32> to vector<16xf32>
    %247 = vector.shape_cast %246 : vector<16xf32> to vector<16x1xf32>
    %cst_107 = arith.constant 3.200000e+01 : f32
    %248 = vector.broadcast %cst_107 : f32 to vector<16x1xf32>
    %249 = arith.divf %247, %248 : vector<16x1xf32>
    %250 = vector.broadcast %249 : vector<16x1xf32> to vector<16x32xf32>
    %251 = arith.subf %241, %250 : vector<16x32xf32>
    %252 = arith.mulf %251, %251 : vector<16x32xf32>
    %cst_108 = arith.constant dense<0.000000e+00> : vector<16xf32>
    %253 = vector.multi_reduction <add>, %252, %cst_108 [1] : vector<16x32xf32> to vector<16xf32>
    %254 = vector.shape_cast %253 : vector<16xf32> to vector<16x1xf32>
    %cst_109 = arith.constant 3.200000e+01 : f32
    %255 = vector.broadcast %cst_109 : f32 to vector<16x1xf32>
    %256 = arith.divf %254, %255 : vector<16x1xf32>
    %cst_110 = arith.constant 9.99999996E-13 : f32
    %257 = vector.broadcast %cst_110 : f32 to vector<16x1xf32>
    %258 = arith.addf %256, %257 : vector<16x1xf32>
    %259 = math.rsqrt %258 : vector<16x1xf32>
    %260 = vector.broadcast %259 : vector<16x1xf32> to vector<16x32xf32>
    %261 = arith.mulf %251, %260 : vector<16x32xf32>
    %262 = vector.broadcast %243 : vector<1x32xf32> to vector<16x32xf32>
    %263 = arith.mulf %261, %262 : vector<16x32xf32>
    %264 = vector.broadcast %245 : vector<1x32xf32> to vector<16x32xf32>
    %265 = arith.addf %263, %264 : vector<16x32xf32>
    %266 = arith.truncf %265 : vector<16x32xf32> to vector<16x32xbf16>
    %c1_111 = arith.constant 1 : index
    %c0_112 = arith.constant 0 : index
    %c0_113 = arith.constant 0 : index
    %267 = vector.load %arg10[%c1_111, %c0_112, %c0_113] : memref<2x32x64xbf16, #tpu.memory_space<vmem>>, vector<1x32x64xbf16>
    %268 = vector.shape_cast %267 : vector<1x32x64xbf16> to vector<32x64xbf16>
    %cst_114 = arith.constant dense<0.000000e+00> : vector<16x64xf32>
    %269 = tpu.matmul %266, %268, %cst_114 {dimension_numbers = #tpu.dot_dimension_numbers<[1], [0], [0], [1], [0, 0, 1, 1], [], []>} : vector<16x32xbf16>, vector<32x64xbf16>, vector<16x64xf32> -> vector<16x64xf32>
    %c1_115 = arith.constant 1 : index
    %c0_116 = arith.constant 0 : index
    %c0_117 = arith.constant 0 : index
    %270 = vector.load %arg11[%c1_115, %c0_116, %c0_117] : memref<2x1x64xf32, #tpu.memory_space<vmem>>, vector<1x1x64xf32>
    %271 = vector.shape_cast %270 : vector<1x1x64xf32> to vector<1x64xf32>
    %272 = vector.broadcast %271 : vector<1x64xf32> to vector<16x64xf32>
    %273 = arith.addf %269, %272 : vector<16x64xf32>
    %cst_118 = arith.constant 5.000000e-01 : f32
    %274 = vector.broadcast %cst_118 : f32 to vector<16x64xf32>
    %275 = arith.mulf %274, %273 : vector<16x64xf32>
    %cst_119 = arith.constant 4.471500e-02 : f32
    %276 = vector.broadcast %cst_119 : f32 to vector<16x64xf32>
    %277 = arith.mulf %276, %273 : vector<16x64xf32>
    %278 = arith.mulf %277, %273 : vector<16x64xf32>
    %279 = arith.mulf %278, %273 : vector<16x64xf32>
    %280 = arith.addf %273, %279 : vector<16x64xf32>
    %cst_120 = arith.constant 0.797884583 : f32
    %281 = vector.broadcast %cst_120 : f32 to vector<16x64xf32>
    %282 = arith.mulf %281, %280 : vector<16x64xf32>
    %283 = math.tanh %282 : vector<16x64xf32>
    %cst_121 = arith.constant 1.000000e+00 : f32
    %284 = vector.broadcast %cst_121 : f32 to vector<16x64xf32>
    %285 = arith.addf %284, %283 : vector<16x64xf32>
    %286 = arith.mulf %275, %285 : vector<16x64xf32>
    %287 = arith.truncf %286 : vector<16x64xf32> to vector<16x64xbf16>
    %c1_122 = arith.constant 1 : index
    %c0_123 = arith.constant 0 : index
    %c0_124 = arith.constant 0 : index
    %288 = vector.load %arg12[%c1_122, %c0_123, %c0_124] : memref<2x64x32xbf16, #tpu.memory_space<vmem>>, vector<1x64x32xbf16>
    %289 = vector.shape_cast %288 : vector<1x64x32xbf16> to vector<64x32xbf16>
    %cst_125 = arith.constant dense<0.000000e+00> : vector<16x32xf32>
    %290 = tpu.matmul %287, %289, %cst_125 {dimension_numbers = #tpu.dot_dimension_numbers<[1], [0], [0], [1], [0, 0, 1, 1], [], []>} : vector<16x64xbf16>, vector<64x32xbf16>, vector<16x32xf32> -> vector<16x32xf32>
    %c1_126 = arith.constant 1 : index
    %c0_127 = arith.constant 0 : index
    %c0_128 = arith.constant 0 : index
    %291 = vector.load %arg13[%c1_126, %c0_127, %c0_128] : memref<2x1x32xf32, #tpu.memory_space<vmem>>, vector<1x1x32xf32>
    %292 = vector.shape_cast %291 : vector<1x1x32xf32> to vector<1x32xf32>
    %293 = vector.broadcast %292 : vector<1x32xf32> to vector<16x32xf32>
    %294 = arith.addf %290, %293 : vector<16x32xf32>
    %295 = arith.addf %294, %265 : vector<16x32xf32>
    %c1_129 = arith.constant 1 : index
    %c0_130 = arith.constant 0 : index
    %c0_131 = arith.constant 0 : index
    %296 = vector.load %arg14[%c1_129, %c0_130, %c0_131] : memref<2x1x32xf32, #tpu.memory_space<vmem>>, vector<1x1x32xf32>
    %297 = vector.shape_cast %296 : vector<1x1x32xf32> to vector<1x32xf32>
    %c1_132 = arith.constant 1 : index
    %c0_133 = arith.constant 0 : index
    %c0_134 = arith.constant 0 : index
    %298 = vector.load %arg15[%c1_132, %c0_133, %c0_134] : memref<2x1x32xf32, #tpu.memory_space<vmem>>, vector<1x1x32xf32>
    %299 = vector.shape_cast %298 : vector<1x1x32xf32> to vector<1x32xf32>
    %cst_135 = arith.constant dense<0.000000e+00> : vector<16xf32>
    %300 = vector.multi_reduction <add>, %295, %cst_135 [1] : vector<16x32xf32> to vector<16xf32>
    %301 = vector.shape_cast %300 : vector<16xf32> to vector<16x1xf32>
    %cst_136 = arith.constant 3.200000e+01 : f32
    %302 = vector.broadcast %cst_136 : f32 to vector<16x1xf32>
    %303 = arith.divf %301, %302 : vector<16x1xf32>
    %304 = vector.broadcast %303 : vector<16x1xf32> to vector<16x32xf32>
    %305 = arith.subf %295, %304 : vector<16x32xf32>
    %306 = arith.mulf %305, %305 : vector<16x32xf32>
    %cst_137 = arith.constant dense<0.000000e+00> : vector<16xf32>
    %307 = vector.multi_reduction <add>, %306, %cst_137 [1] : vector<16x32xf32> to vector<16xf32>
    %308 = vector.shape_cast %307 : vector<16xf32> to vector<16x1xf32>
    %cst_138 = arith.constant 3.200000e+01 : f32
    %309 = vector.broadcast %cst_138 : f32 to vector<16x1xf32>
    %310 = arith.divf %308, %309 : vector<16x1xf32>
    %cst_139 = arith.constant 9.99999996E-13 : f32
    %311 = vector.broadcast %cst_139 : f32 to vector<16x1xf32>
    %312 = arith.addf %310, %311 : vector<16x1xf32>
    %313 = math.rsqrt %312 : vector<16x1xf32>
    %314 = vector.broadcast %313 : vector<16x1xf32> to vector<16x32xf32>
    %315 = arith.mulf %305, %314 : vector<16x32xf32>
    %316 = vector.broadcast %297 : vector<1x32xf32> to vector<16x32xf32>
    %317 = arith.mulf %315, %316 : vector<16x32xf32>
    %318 = vector.broadcast %299 : vector<1x32xf32> to vector<16x32xf32>
    %319 = arith.addf %317, %318 : vector<16x32xf32>
    %320 = tpu.iota {dimensions = array<i32: 0>} : vector<8x16xi32>
    %321 = tpu.iota {dimensions = array<i32: 1>} : vector<8x16xi32>
    %c8_i32 = arith.constant 8 : i32
    %322 = vector.broadcast %c8_i32 : i32 to vector<8x16xi32>
    %323 = arith.muli %320, %322 : vector<8x16xi32>
    %324 = arith.cmpi eq, %321, %323 : vector<8x16xi32>
    %325 = arith.extui %324 : vector<8x16xi1> to vector<8x16xi32>
    %326 = arith.sitofp %325 : vector<8x16xi32> to vector<8x16xf32>
    %cst_140 = arith.constant dense<0.000000e+00> : vector<8x32xf32>
    %327 = tpu.matmul %326, %319, %cst_140 {dimension_numbers = #tpu.dot_dimension_numbers<[1], [0], [0], [1], [0, 0, 1, 1], [], []>} : vector<8x16xf32>, vector<16x32xf32>, vector<8x32xf32> -> vector<8x32xf32>
    %328 = arith.truncf %327 : vector<8x32xf32> to vector<8x32xbf16>
    %c0_141 = arith.constant 0 : index
    %c0_142 = arith.constant 0 : index
    %329 = vector.load %arg16[%c0_141, %c0_142] : memref<32x32xbf16, #tpu.memory_space<vmem>>, vector<32x32xbf16>
    %cst_143 = arith.constant dense<0.000000e+00> : vector<8x32xf32>
    %330 = tpu.matmul %328, %329, %cst_143 {dimension_numbers = #tpu.dot_dimension_numbers<[1], [0], [0], [1], [0, 0, 1, 1], [], []>} : vector<8x32xbf16>, vector<32x32xbf16>, vector<8x32xf32> -> vector<8x32xf32>
    %c0_144 = arith.constant 0 : index
    %c0_145 = arith.constant 0 : index
    %331 = vector.load %arg17[%c0_144, %c0_145] : memref<1x32xf32, #tpu.memory_space<vmem>>, vector<1x32xf32>
    %332 = vector.broadcast %331 : vector<1x32xf32> to vector<8x32xf32>
    %333 = arith.addf %330, %332 : vector<8x32xf32>
    %334 = math.tanh %333 : vector<8x32xf32>
    %c0_146 = arith.constant 0 : index
    %c0_147 = arith.constant 0 : index
    %335 = vector.load %arg18[%c0_146, %c0_147] : memref<1x32xf32, #tpu.memory_space<vmem>>, vector<1x32xf32>
    %336 = vector.broadcast %335 : vector<1x32xf32> to vector<8x32xf32>
    %337 = arith.mulf %334, %336 : vector<8x32xf32>
    %cst_148 = arith.constant dense<0.000000e+00> : vector<8xf32>
    %338 = vector.multi_reduction <add>, %337, %cst_148 [1] : vector<8x32xf32> to vector<8xf32>
    %339 = vector.shape_cast %338 : vector<8xf32> to vector<8x1xf32>
    %c0_149 = arith.constant 0 : index
    %c0_150 = arith.constant 0 : index
    %340 = vector.load %arg19[%c0_149, %c0_150] : memref<1x1xf32, #tpu.memory_space<vmem>>, vector<1x1xf32>
    %341 = vector.broadcast %340 : vector<1x1xf32> to vector<8x1xf32>
    %342 = arith.addf %339, %341 : vector<8x1xf32>
    %343 = vector.shape_cast %342 : vector<8x1xf32> to vector<8x1xf32>
    %344 = vector.broadcast %343 : vector<8x1xf32> to vector<8x128xf32>
    %c0_151 = arith.constant 0 : index
    %c0_152 = arith.constant 0 : index
    %345 = vector.load %arg20[%c0_151, %c0_152] : memref<8x128xf32, #tpu.memory_space<vmem>>, vector<8x128xf32>
    tpu.vector_store %arg20[%c0_151, %c0_152], %344 {strides = array<i32>} : memref<8x128xf32, #tpu.memory_space<vmem>>, vector<8x128xf32>,
    return
  }
}

</mosaic_0001>

<llo_original>
// kernel: forward.1
$region0: #{forward.1}
  #allocation0 [shape = 'u32[]', space=smem, size = 0x4, offset = 0x4, fixed_abs, tag = 'smem constant byte address 0x4 - core index']
  #allocation1 [shape = 'u32[144,128]{1,0:T(1,128)}', space=vmem, size = 0x12000, scoped, tag = 'internal scratch']
  #allocation2 [shape = 'f32[1,1]{1,0:T(1,128)S(1)}', space=vmem, size = 0x200, scoped, tag = 'scoped memory for forward.1']
  %s0 = inlined_call_operand.vmem [shape: f32[16,32], index: 0, kind: input, shape index: {}]
  %s1 = inlined_call_operand.vmem [shape: f32[2,8], index: 1, kind: input, shape index: {}]
  %s2 = inlined_call_operand.vmem [shape: f32[1,32], index: 2, kind: input, shape index: {}]
  %s3 = inlined_call_operand.vmem [shape: f32[1,32], index: 3, kind: input, shape index: {}]
  %s4 = inlined_call_operand.vmem [shape: bf16[2,32,96], index: 4, kind: input, shape index: {}]
  %s5 = inlined_call_operand.vmem [shape: f32[2,1,96], index: 5, kind: input, shape index: {}]
  %s6 = inlined_call_operand.vmem [shape: bf16[2,32,32], index: 6, kind: input, shape index: {}]
  %s7 = inlined_call_operand.vmem [shape: f32[2,1,32], index: 7, kind: input, shape index: {}]
  %s8 = inlined_call_operand.vmem [shape: f32[2,1,32], index: 8, kind: input, shape index: {}]
  %s9 = inlined_call_operand.vmem [shape: f32[2,1,32], index: 9, kind: input, shape index: {}]
  %s10 = inlined_call_operand.vmem [shape: bf16[2,32,64], index: 10, kind: input, shape index: {}]
  %s11 = inlined_call_operand.vmem [shape: f32[2,1,64], index: 11, kind: input, shape index: {}]
  %s12 = inlined_call_operand.vmem [shape: bf16[2,64,32], index: 12, kind: input, shape index: {}]
  %s13 = inlined_call_operand.vmem [shape: f32[2,1,32], index: 13, kind: input, shape index: {}]
  %s14 = inlined_call_operand.vmem [shape: f32[2,1,32], index: 14, kind: input, shape index: {}]
  %s15 = inlined_call_operand.vmem [shape: f32[2,1,32], index: 15, kind: input, shape index: {}]
  %s16 = inlined_call_operand.vmem [shape: bf16[32,32], index: 16, kind: input, shape index: {}]
  %s17 = inlined_call_operand.vmem [shape: f32[1,32], index: 17, kind: input, shape index: {}]
  %s18 = inlined_call_operand.vmem [shape: f32[1,32], index: 18, kind: input, shape index: {}]
  %s19 = inlined_call_operand.<no memory space> [shape: f32[1,1], index: 19, kind: input, shape index: {}]
  %s20 = inlined_call_operand.vmem [shape: f32[8,128], index: 20, kind: output, shape index: {}]
  %s21 = sld [smem:[#allocation0]]
  $region90: #{forward.1} parent=0
    _
  %s23 = ssub.s32 1, %s21
  %s24 = scalar_select 0, %s23, %s21
  %v25 = vstv %s19
  %26 = vst [vmem:[#allocation2] sm:$0x1] %v25
  // Predicated region
  $region2: #{forward.1} parent=0 // pred_check
    _
  $region3: #{forward.1} parent=0 // pred_check_branch
    %28 = sbr.rel (0) target = $region5
  $region4: #{forward.1} parent=0 // pred_region
    _
  $region5: #{forward.1} parent=0 // pred_fallthru
    _
  // Predicated region
  $region6: #{forward.1} parent=0 // pred_check
    _
  $region7: #{forward.1} parent=0 // pred_check_branch
    %30 = sbr.rel (0) target = $region9
  $region8: #{forward.1} parent=0 // pred_region
    _
  $region9: #{forward.1} parent=0 // pred_fallthru
    _
  // Predicated region
  $region10: #{forward.1} parent=0 // pred_check
    _
  $region11: #{forward.1} parent=0 // pred_check_branch
    %32 = sbr.rel (0) target = $region13
  $region12: #{forward.1} parent=0 // pred_region
    _
  $region13: #{forward.1} parent=0 // pred_fallthru
    _
  // Predicated region
  $region14: #{forward.1} parent=0 // pred_check
    _
  $region15: #{forward.1} parent=0 // pred_check_branch
    %34 = sbr.rel (0) target = $region17
  $region16: #{forward.1} parent=0 // pred_region
    _
  $region17: #{forward.1} parent=0 // pred_fallthru
    _
  // Predicated region
  $region18: #{forward.1} parent=0 // pred_check
    _
  $region19: #{forward.1} parent=0 // pred_check_branch
    %36 = sbr.rel (0) target = $region21
  $region20: #{forward.1} parent=0 // pred_region
    _
  $region21: #{forward.1} parent=0 // pred_fallthru
    _
  // Predicated region
  $region22: #{forward.1} parent=0 // pred_check
    _
  $region23: #{forward.1} parent=0 // pred_check_branch
    %38 = sbr.rel (0) target = $region25
  $region24: #{forward.1} parent=0 // pred_region
    _
  $region25: #{forward.1} parent=0 // pred_fallthru
    _
  // Predicated region
  $region26: #{forward.1} parent=0 // pred_check
    _
  $region27: #{forward.1} parent=0 // pred_check_branch
    %40 = sbr.rel (0) target = $region29
  $region28: #{forward.1} parent=0 // pred_region
    _
  $region29: #{forward.1} parent=0 // pred_fallthru
    _
  // Predicated region
  $region30: #{forward.1} parent=0 // pred_check
    _
  $region31: #{forward.1} parent=0 // pred_check_branch
    %42 = sbr.rel (0) target = $region33
  $region32: #{forward.1} parent=0 // pred_region
    _
  $region33: #{forward.1} parent=0 // pred_fallthru
    _
  // Predicated region
  $region34: #{forward.1} parent=0 // pred_check
    _
  $region35: #{forward.1} parent=0 // pred_check_branch
    %44 = sbr.rel (0) target = $region37
  $region36: #{forward.1} parent=0 // pred_region
    _
  $region37: #{forward.1} parent=0 // pred_fallthru
    _
  // Predicated region
  $region38: #{forward.1} parent=0 // pred_check
    _
  $region39: #{forward.1} parent=0 // pred_check_branch
    %46 = sbr.rel (0) target = $region41
  $region40: #{forward.1} parent=0 // pred_region
    _
  $region41: #{forward.1} parent=0 // pred_fallthru
    _
  // Predicated region
  $region42: #{forward.1} parent=0 // pred_check
    _
  $region43: #{forward.1} parent=0 // pred_check_branch
    %48 = sbr.rel (0) target = $region45
  $region44: #{forward.1} parent=0 // pred_region
    _
  $region45: #{forward.1} parent=0 // pred_fallthru
    _
  // Predicated region
  $region46: #{forward.1} parent=0 // pred_check
    _
  $region47: #{forward.1} parent=0 // pred_check_branch
    %50 = sbr.rel (0) target = $region49
  $region48: #{forward.1} parent=0 // pred_region
    _
  $region49: #{forward.1} parent=0 // pred_fallthru
    _
  // Predicated region
  $region50: #{forward.1} parent=0 // pred_check
    _
  $region51: #{forward.1} parent=0 // pred_check_branch
    %52 = sbr.rel (0) target = $region53
  $region52: #{forward.1} parent=0 // pred_region
    _
  $region53: #{forward.1} parent=0 // pred_fallthru
    _
  // Predicated region
  $region54: #{forward.1} parent=0 // pred_check
    _
  $region55: #{forward.1} parent=0 // pred_check_branch
    %54 = sbr.rel (0) target = $region57
  $region56: #{forward.1} parent=0 // pred_region
    _
  $region57: #{forward.1} parent=0 // pred_fallthru
    _
  // Predicated region
  $region58: #{forward.1} parent=0 // pred_check
    _
  $region59: #{forward.1} parent=0 // pred_check_branch
    %56 = sbr.rel (0) target = $region61
  $region60: #{forward.1} parent=0 // pred_region
    _
  $region61: #{forward.1} parent=0 // pred_fallthru
    _
  // Predicated region
  $region62: #{forward.1} parent=0 // pred_check
    _
  $region63: #{forward.1} parent=0 // pred_check_branch
    %58 = sbr.rel (0) target = $region65
  $region64: #{forward.1} parent=0 // pred_region
    _
  $region65: #{forward.1} parent=0 // pred_fallthru
    _
  // Predicated region
  $region66: #{forward.1} parent=0 // pred_check
    _
  $region67: #{forward.1} parent=0 // pred_check_branch
    %60 = sbr.rel (0) target = $region69
  $region68: #{forward.1} parent=0 // pred_region
    _
  $region69: #{forward.1} parent=0 // pred_fallthru
    _
  // Predicated region
  $region70: #{forward.1} parent=0 // pred_check
    _
  $region71: #{forward.1} parent=0 // pred_check_branch
    %62 = sbr.rel (0) target = $region73
  $region72: #{forward.1} parent=0 // pred_region
    _
  $region73: #{forward.1} parent=0 // pred_fallthru
    _
  // Predicated region
  $region74: #{forward.1} parent=0 // pred_check
    _
  $region75: #{forward.1} parent=0 // pred_check_branch
    %64 = sbr.rel (0) target = $region77
  $region76: #{forward.1} parent=0 // pred_region
    _
  $region77: #{forward.1} parent=0 // pred_fallthru
    _
  // Predicated region
  $region78: #{forward.1} parent=0 // pred_check
    _
  $region79: #{forward.1} parent=0 // pred_check_branch
    %66 = sbr.rel (0) target = $region81
  $region80: #{forward.1} parent=0 // pred_region
    _
  $region81: #{forward.1} parent=0 // pred_fallthru
    _
  %v68 = vld [vmem:[%s0] sm:$0xff]
  %v69 = vld [vmem:[%s0 + $0x8] sm:$0xff]
  %v70 = vld [vmem:[%s2] sm:$0x1]
  %v71 = vld [vmem:[%s3] sm:$0x1]
  %vm72 = vcmask 261120
  %v73 = vsel %vm72, %v68, 0.0
  %74 = vadd.xlane.f32.xlu0 %v73
  %v75 = vpop.xlane.xlu0 %74
  %v76 = vsel %vm72, %v69, 0.0
  %77 = vadd.xlane.f32.xlu0 %v76
  %v78 = vpop.xlane.xlu0 %77
  %v79 = vrcp.pop 32.0
  %v80 = vmul.f32 %v75, %v79
  %v81 = vmul.f32 %v78, %v79
  %v82 = vsub.f32 %v68, %v80
  %v83 = vsub.f32 %v69, %v81
  %v84 = vmul.f32 %v82, %v82
  %v85 = vmul.f32 %v83, %v83
  %v86 = vsel %vm72, %v84, 0.0
  %87 = vadd.xlane.f32.xlu0 %v86
  %v88 = vpop.xlane.xlu0 %87
  %v89 = vsel %vm72, %v85, 0.0
  %90 = vadd.xlane.f32.xlu0 %v89
  %v91 = vpop.xlane.xlu0 %90
  %v92 = vmul.f32 %v88, %v79
  %v93 = vmul.f32 %v91, %v79
  %v94 = vadd.f32 %v92, 1e-12
  %v95 = vadd.f32 %v93, 1e-12
  %v96 = vrsqrt.pop %v94
  %v97 = vrsqrt.pop %v95
  %v98 = vmul.f32 %v82, %v96
  %v99 = vmul.f32 %v83, %v97
  %v101 = vlaneseq
  %v102 = vshrl.u32 %v101, 7
  %v103 = vsub.s32 0, %v102
  %v104 = vrot.slane %v70, %v103
  %v106 = vmul.f32 %v98, %v104
  %v107 = vmul.f32 %v99, %v104
  %v109 = vlaneseq
  %v110 = vshrl.u32 %v109, 7
  %v111 = vsub.s32 0, %v110
  %v112 = vrot.slane %v71, %v111
  %v114 = vadd.f32 %v106, %v112
  %v115 = vadd.f32 %v107, %v112
  %v116 = vld [vmem:[%s1] sm:$0x3]
  %v117 = vsub.f32 1.0, %v116
  %v118 = vmul.f32 %v117, -10000.0
  %v121 = vunpack.c.l.s4 1966171168
  %v122 = vunpack.c.0.s8 %v121
  %v123 = vlaneseq
  %v124 = vshrl.u32 %v123, 7
  %v125 = vsub.s32 %v122, %v124
  %v126 = vrot.slane %v118, %v125
  %v127 = vcombine.high %v126, %v126
  %v129 = vunpack.c.l.s4 1966171168
  %v130 = vunpack.c.0.s8 %v129
  %v131 = vlaneseq
  %v132 = vshrl.u32 %v131, 7
  %v133 = vsub.s32 %v130, %v132
  %v134 = vrot.slane %v126, %v133
  %v136 = vunpack.c.l.s4 1966171168
  %v137 = vunpack.c.0.s8 %v136
  %v138 = vlaneseq
  %v139 = vshrl.u32 %v138, 7
  %v140 = vsub.s32 %v137, %v139
  %v141 = vrot.slane %v127, %v140
  %v142 = vlaneseq
  %v143 = vshrl.u32 %v142, 7
  %v144 = vsub.s32 0, %v143
  %v145 = vrot.slane %v134, %v144
  %v146 = vlaneseq
  %v147 = vshrl.u32 %v146, 7
  %v148 = vsub.s32 0, %v147
  %v149 = vrot.slane %v141, %v148
  %v152 = vpack.c.bf16 %v115, %v114
  %v153 = vld [vmem:[%s4] sm:$0xf]
  %v154 = vld [vmem:[%s4 + $0x4] sm:$0xf]
  %v155 = vld [vmem:[%s4 + $0x8] sm:$0xf]
  %v156 = vld [vmem:[%s4 + $0xc] sm:$0xf]
  %v157 = vld [vmem:[%s5] sm:$0x1]
  %v159 = vlaneseq
  %v160 = vshrl.u32 %v159, 7
  %v161 = vsub.s32 0, %v160
  %v162 = vrot.slane %v157, %v161
  %v168 = vunpack.c.l.b16 %v153
  %v169 = vunpack.c.l.b16 %v154
  %v170 = vunpack.c.l.b16 %v155
  %v171 = vunpack.c.l.b16 %v156
  %v172 = vpack.c.b16 %v169, %v168
  %v173 = vpack.c.b16 %v171, %v170
  %v177 = vsel %vm72, %v152, 0
  %179 = vmatprep.subr.bf16.mxu0 0
  %180 = vmatpush1.bf16.msra.mxu0 %v172
  %181 = vmatprep.subr.bf16.mxu0 0
  %182 = vmatpush1.bf16.msra.mxu0 %v173
  %183 = vmatprep.subr.bf16.mxu0 0
  %184 = vmatpush1.bf16.msra.mxu0 0
  %185 = vmatprep.subr.bf16.mxu0 0
  %186 = vmatpush1.bf16.msra.mxu0 0
  %187 = vmatprep.subr.bf16.mxu0 0
  %188 = vmatpush1.bf16.msra.mxu0 0
  %189 = vmatprep.subr.bf16.mxu0 0
  %190 = vmatpush1.bf16.msra.mxu0 0
  %191 = vmatprep.subr.bf16.mxu0 0
  %192 = vmatpush1.bf16.msra.mxu0 0
  %193 = vmatprep.subr.bf16.mxu0 0
  %194 = vmatpush1.bf16.msra.mxu0 0
  %195 = vmatprep.subr.bf16.mxu0 0
  %196 = vmatpush1.bf16.msra.mxu0 0
  %197 = vmatprep.subr.bf16.mxu0 0
  %198 = vmatpush1.bf16.msra.mxu0 0
  %199 = vmatprep.subr.bf16.mxu0 0
  %200 = vmatpush1.bf16.msra.mxu0 0
  %201 = vmatprep.subr.bf16.mxu0 0
  %202 = vmatpush1.bf16.msra.mxu0 0
  %203 = vmatprep.subr.bf16.mxu0 0
  %204 = vmatpush1.bf16.msra.mxu0 0
  %205 = vmatprep.subr.bf16.mxu0 0
  %206 = vmatpush1.bf16.msra.mxu0 0
  %207 = vmatprep.subr.bf16.mxu0 0
  %208 = vmatpush1.bf16.msra.mxu0 0
  %209 = vmatprep.subr.bf16.mxu0 0
  %210 = vmatpush1.bf16.msra.mxu0 0
  %211 = vmatprep.mubr.bf16.mxu0 0
  %212 = vmatmul.mubr.bf16.gmra.mrb[0].mxu0 %v177
  %v213 = vpop.f32.mrb[0].mxu0
  %v214 = vadd.f32 %v162, %v213
  %v215 = vpop.f32.mrb[0].mxu0
  %v216 = vpop.f32.mrb[0].mxu0
  %v217 = vadd.f32 %v162, %v216
  %v218 = vpop.f32.mrb[0].mxu0
  %219 = vdwg.mxu0
  %v220 = vpack.c.bf16 %v214, %v214
  %v221 = vpack.c.bf16 %v217, %v217
  %223 = vrot.lane.b32.xlu0 %v220, 96
  %v224 = vpop.permute.xlu0 %223
  %vm225 = vcmask 130048
  %v227 = vsel %vm225, %v220, 0
  %v230 = vsel %vm225, %v224, 0
  %232 = vmatprep.subr.bf16.mxu0 0
  %233 = vmatpush1.bf16.xpose.msra.mxu0 %v230
  %234 = vmatprep.subr.bf16.mxu0 0
  %235 = vmatpush1.bf16.xpose.msra.mxu0 0
  %236 = vmatprep.subr.bf16.mxu0 0
  %237 = vmatpush1.bf16.xpose.msra.mxu0 0
  %238 = vmatprep.subr.bf16.mxu0 0
  %239 = vmatpush1.bf16.xpose.msra.mxu0 0
  %240 = vmatprep.subr.bf16.mxu0 0
  %241 = vmatpush1.bf16.xpose.msra.mxu0 0
  %242 = vmatprep.subr.bf16.mxu0 0
  %243 = vmatpush1.bf16.xpose.msra.mxu0 0
  %244 = vmatprep.subr.bf16.mxu0 0
  %245 = vmatpush1.bf16.xpose.msra.mxu0 0
  %246 = vmatprep.subr.bf16.mxu0 0
  %247 = vmatpush1.bf16.xpose.msra.mxu0 0
  %248 = vmatprep.subr.bf16.mxu0 0
  %249 = vmatpush1.bf16.xpose.msra.mxu0 0
  %250 = vmatprep.subr.bf16.mxu0 0
  %251 = vmatpush1.bf16.xpose.msra.mxu0 0
  %252 = vmatprep.subr.bf16.mxu0 0
  %253 = vmatpush1.bf16.xpose.msra.mxu0 0
  %254 = vmatprep.subr.bf16.mxu0 0
  %255 = vmatpush1.bf16.xpose.msra.mxu0 0
  %256 = vmatprep.subr.bf16.mxu0 0
  %257 = vmatpush1.bf16.xpose.msra.mxu0 0
  %258 = vmatprep.subr.bf16.mxu0 0
  %259 = vmatpush1.bf16.xpose.msra.mxu0 0
  %260 = vmatprep.subr.bf16.mxu0 0
  %261 = vmatpush1.bf16.xpose.msra.mxu0 0
  %262 = vmatprep.subr.bf16.mxu0 0
  %263 = vmatpush1.bf16.xpose.msra.mxu0 0
  %264 = vmatprep.mubr.bf16.mxu0 0
  %265 = vmatmul.mubr.bf16.gmra.mrb[0].mxu0 %v227
  %v266 = vpop.f32.mrb[0].mxu0
  %v267 = vadd.f32 0.0, %v266
  %v268 = vpop.f32.mrb[0].mxu0
  %v269 = vpop.f32.mrb[0].mxu0
  %v270 = vpop.f32.mrb[0].mxu0
  %271 = vdwg.mxu0
  %273 = vrot.lane.b32.xlu0 %v221, 96
  %v274 = vpop.permute.xlu0 %273
  %v276 = vsel %vm225, %v221, 0
  %v279 = vsel %vm225, %v274, 0
  %281 = vmatprep.subr.bf16.mxu0 0
  %282 = vmatpush1.bf16.xpose.msra.mxu0 %v279
  %283 = vmatprep.subr.bf16.mxu0 0
  %284 = vmatpush1.bf16.xpose.msra.mxu0 0
  %285 = vmatprep.subr.bf16.mxu0 0
  %286 = vmatpush1.bf16.xpose.msra.mxu0 0
  %287 = vmatprep.subr.bf16.mxu0 0
  %288 = vmatpush1.bf16.xpose.msra.mxu0 0
  %289 = vmatprep.subr.bf16.mxu0 0
  %290 = vmatpush1.bf16.xpose.msra.mxu0 0
  %291 = vmatprep.subr.bf16.mxu0 0
  %292 = vmatpush1.bf16.xpose.msra.mxu0 0
  %293 = vmatprep.subr.bf16.mxu0 0
  %294 = vmatpush1.bf16.xpose.msra.mxu0 0
  %295 = vmatprep.subr.bf16.mxu0 0
  %296 = vmatpush1.bf16.xpose.msra.mxu0 0
  %297 = vmatprep.subr.bf16.mxu0 0
  %298 = vmatpush1.bf16.xpose.msra.mxu0 0
  %299 = vmatprep.subr.bf16.mxu0 0
  %300 = vmatpush1.bf16.xpose.msra.mxu0 0
  %301 = vmatprep.subr.bf16.mxu0 0
  %302 = vmatpush1.bf16.xpose.msra.mxu0 0
  %303 = vmatprep.subr.bf16.mxu0 0
  %304 = vmatpush1.bf16.xpose.msra.mxu0 0
  %305 = vmatprep.subr.bf16.mxu0 0
  %306 = vmatpush1.bf16.xpose.msra.mxu0 0
  %307 = vmatprep.subr.bf16.mxu0 0
  %308 = vmatpush1.bf16.xpose.msra.mxu0 0
  %309 = vmatprep.subr.bf16.mxu0 0
  %310 = vmatpush1.bf16.xpose.msra.mxu0 0
  %311 = vmatprep.subr.bf16.mxu0 0
  %312 = vmatpush1.bf16.xpose.msra.mxu0 0
  %313 = vmatprep.mubr.bf16.mxu0 0
  %314 = vmatmul.mubr.bf16.gmra.mrb[0].mxu0 %v276
  %v315 = vpop.f32.mrb[0].mxu0
  %v316 = vadd.f32 0.0, %v315
  %v317 = vpop.f32.mrb[0].mxu0
  %v318 = vpop.f32.mrb[0].mxu0
  %v319 = vpop.f32.mrb[0].mxu0
  %320 = vdwg.mxu0
  %v321 = vmul.f32 %v267, 0.25
  %v322 = vmul.f32 %v316, 0.25
  %v323 = vadd.f32 %v321, %v145
  %v324 = vadd.f32 %v322, %v149
  %vm325 = vcmask 64512
  %v326 = vsel %vm325, %v323, -inf
  %327 = vmax.xlane.f32.xlu0 %v326
  %v328 = vpop.xlane.xlu0 %327
  %v329 = vsel %vm325, %v324, -inf
  %330 = vmax.xlane.f32.xlu0 %v329
  %v331 = vpop.xlane.xlu0 %330
  %v332 = vsub.f32 %v323, %v328
  %v333 = vsub.f32 %v324, %v331
  %v334 = vmul.f32 %v332, 1.442695
  %v335 = vpow.pop %v334
  %v336 = vmul.f32 %v333, 1.442695
  %v337 = vpow.pop %v336
  %v338 = vsel %vm325, %v335, 0.0
  %339 = vadd.xlane.f32.xlu0 %v338
  %v340 = vpop.xlane.xlu0 %339
  %v341 = vsel %vm325, %v337, 0.0
  %342 = vadd.xlane.f32.xlu0 %v341
  %v343 = vpop.xlane.xlu0 %342
  %v344 = vrcp.pop %v340
  %v345 = vmul.f32 %v335, %v344
  %v346 = vrcp.pop %v343
  %v347 = vmul.f32 %v337, %v346
  %v348 = vpack.c.bf16 %v345, %v345
  %v349 = vpack.c.bf16 %v347, %v347
  %350 = vrot.lane.b32.xlu0 %v220, 64
  %v351 = vpop.permute.xlu0 %350
  %v353 = vsel %vm325, %v348, 0
  %vm355 = vcmask 1043456
  %v357 = vsel %vm355, %v351, 0
  %359 = vmatprep.subr.bf16.mxu0 0
  %360 = vmatpush1.bf16.msra.mxu0 %v357
  %361 = vmatprep.subr.bf16.mxu0 0
  %362 = vmatpush1.bf16.msra.mxu0 0
  %363 = vmatprep.subr.bf16.mxu0 0
  %364 = vmatpush1.bf16.msra.mxu0 0
  %365 = vmatprep.subr.bf16.mxu0 0
  %366 = vmatpush1.bf16.msra.mxu0 0
  %367 = vmatprep.subr.bf16.mxu0 0
  %368 = vmatpush1.bf16.msra.mxu0 0
  %369 = vmatprep.subr.bf16.mxu0 0
  %370 = vmatpush1.bf16.msra.mxu0 0
  %371 = vmatprep.subr.bf16.mxu0 0
  %372 = vmatpush1.bf16.msra.mxu0 0
  %373 = vmatprep.subr.bf16.mxu0 0
  %374 = vmatpush1.bf16.msra.mxu0 0
  %375 = vmatprep.subr.bf16.mxu0 0
  %376 = vmatpush1.bf16.msra.mxu0 0
  %377 = vmatprep.subr.bf16.mxu0 0
  %378 = vmatpush1.bf16.msra.mxu0 0
  %379 = vmatprep.subr.bf16.mxu0 0
  %380 = vmatpush1.bf16.msra.mxu0 0
  %381 = vmatprep.subr.bf16.mxu0 0
  %382 = vmatpush1.bf16.msra.mxu0 0
  %383 = vmatprep.subr.bf16.mxu0 0
  %384 = vmatpush1.bf16.msra.mxu0 0
  %385 = vmatprep.subr.bf16.mxu0 0
  %386 = vmatpush1.bf16.msra.mxu0 0
  %387 = vmatprep.subr.bf16.mxu0 0
  %388 = vmatpush1.bf16.msra.mxu0 0
  %389 = vmatprep.subr.bf16.mxu0 0
  %390 = vmatpush1.bf16.msra.mxu0 0
  %391 = vmatprep.mubr.bf16.mxu0 0
  %392 = vmatmul.mubr.bf16.gmra.mrb[0].mxu0 %v353
  %v393 = vpop.f32.mrb[0].mxu0
  %v394 = vadd.f32 0.0, %v393
  %v395 = vpop.f32.mrb[0].mxu0
  %v396 = vpop.f32.mrb[0].mxu0
  %v397 = vpop.f32.mrb[0].mxu0
  %398 = vdwg.mxu0
  %399 = vrot.lane.b32.xlu0 %v221, 64
  %v400 = vpop.permute.xlu0 %399
  %v402 = vsel %vm325, %v349, 0
  %v405 = vsel %vm355, %v400, 0
  %407 = vmatprep.subr.bf16.mxu0 0
  %408 = vmatpush1.bf16.msra.mxu0 %v405
  %409 = vmatprep.subr.bf16.mxu0 0
  %410 = vmatpush1.bf16.msra.mxu0 0
  %411 = vmatprep.subr.bf16.mxu0 0
  %412 = vmatpush1.bf16.msra.mxu0 0
  %413 = vmatprep.subr.bf16.mxu0 0
  %414 = vmatpush1.bf16.msra.mxu0 0
  %415 = vmatprep.subr.bf16.mxu0 0
  %416 = vmatpush1.bf16.msra.mxu0 0
  %417 = vmatprep.subr.bf16.mxu0 0
  %418 = vmatpush1.bf16.msra.mxu0 0
  %419 = vmatprep.subr.bf16.mxu0 0
  %420 = vmatpush1.bf16.msra.mxu0 0
  %421 = vmatprep.subr.bf16.mxu0 0
  %422 = vmatpush1.bf16.msra.mxu0 0
  %423 = vmatprep.subr.bf16.mxu0 0
  %424 = vmatpush1.bf16.msra.mxu0 0
  %425 = vmatprep.subr.bf16.mxu0 0
  %426 = vmatpush1.bf16.msra.mxu0 0
  %427 = vmatprep.subr.bf16.mxu0 0
  %428 = vmatpush1.bf16.msra.mxu0 0
  %429 = vmatprep.subr.bf16.mxu0 0
  %430 = vmatpush1.bf16.msra.mxu0 0
  %431 = vmatprep.subr.bf16.mxu0 0
  %432 = vmatpush1.bf16.msra.mxu0 0
  %433 = vmatprep.subr.bf16.mxu0 0
  %434 = vmatpush1.bf16.msra.mxu0 0
  %435 = vmatprep.subr.bf16.mxu0 0
  %436 = vmatpush1.bf16.msra.mxu0 0
  %437 = vmatprep.subr.bf16.mxu0 0
  %438 = vmatpush1.bf16.msra.mxu0 0
  %439 = vmatprep.mubr.bf16.mxu0 0
  %440 = vmatmul.mubr.bf16.gmra.mrb[0].mxu0 %v402
  %v441 = vpop.f32.mrb[0].mxu0
  %v442 = vadd.f32 0.0, %v441
  %v443 = vpop.f32.mrb[0].mxu0
  %v444 = vpop.f32.mrb[0].mxu0
  %v445 = vpop.f32.mrb[0].mxu0
  %446 = vdwg.mxu0
  %447 = vrot.lane.b32.xlu0 %v220, 112
  %v448 = vpop.permute.xlu0 %447
  %449 = vrot.lane.b32.xlu0 %v220, 80
  %v450 = vpop.permute.xlu0 %449
  %v452 = vsel %vm225, %v448, 0
  %v455 = vsel %vm225, %v450, 0
  %457 = vmatprep.subr.bf16.mxu0 0
  %458 = vmatpush1.bf16.xpose.msra.mxu0 %v455
  %459 = vmatprep.subr.bf16.mxu0 0
  %460 = vmatpush1.bf16.xpose.msra.mxu0 0
  %461 = vmatprep.subr.bf16.mxu0 0
  %462 = vmatpush1.bf16.xpose.msra.mxu0 0
  %463 = vmatprep.subr.bf16.mxu0 0
  %464 = vmatpush1.bf16.xpose.msra.mxu0 0
  %465 = vmatprep.subr.bf16.mxu0 0
  %466 = vmatpush1.bf16.xpose.msra.mxu0 0
  %467 = vmatprep.subr.bf16.mxu0 0
  %468 = vmatpush1.bf16.xpose.msra.mxu0 0
  %469 = vmatprep.subr.bf16.mxu0 0
  %470 = vmatpush1.bf16.xpose.msra.mxu0 0
  %471 = vmatprep.subr.bf16.mxu0 0
  %472 = vmatpush1.bf16.xpose.msra.mxu0 0
  %473 = vmatprep.subr.bf16.mxu0 0
  %474 = vmatpush1.bf16.xpose.msra.mxu0 0
  %475 = vmatprep.subr.bf16.mxu0 0
  %476 = vmatpush1.bf16.xpose.msra.mxu0 0
  %477 = vmatprep.subr.bf16.mxu0 0
  %478 = vmatpush1.bf16.xpose.msra.mxu0 0
  %479 = vmatprep.subr.bf16.mxu0 0
  %480 = vmatpush1.bf16.xpose.msra.mxu0 0
  %481 = vmatprep.subr.bf16.mxu0 0
  %482 = vmatpush1.bf16.xpose.msra.mxu0 0
  %483 = vmatprep.subr.bf16.mxu0 0
  %484 = vmatpush1.bf16.xpose.msra.mxu0 0
  %485 = vmatprep.subr.bf16.mxu0 0
  %486 = vmatpush1.bf16.xpose.msra.mxu0 0
  %487 = vmatprep.subr.bf16.mxu0 0
  %488 = vmatpush1.bf16.xpose.msra.mxu0 0
  %489 = vmatprep.mubr.bf16.mxu0 0
  %490 = vmatmul.mubr.bf16.gmra.mrb[0].mxu0 %v452
  %v491 = vpop.f32.mrb[0].mxu0
  %v492 = vadd.f32 0.0, %v491
  %v493 = vpop.f32.mrb[0].mxu0
  %v494 = vpop.f32.mrb[0].mxu0
  %v495 = vpop.f32.mrb[0].mxu0
  %496 = vdwg.mxu0
  %497 = vrot.lane.b32.xlu0 %v221, 112
  %v498 = vpop.permute.xlu0 %497
  %499 = vrot.lane.b32.xlu0 %v221, 80
  %v500 = vpop.permute.xlu0 %499
  %v502 = vsel %vm225, %v498, 0
  %v505 = vsel %vm225, %v500, 0
  %507 = vmatprep.subr.bf16.mxu0 0
  %508 = vmatpush1.bf16.xpose.msra.mxu0 %v505
  %509 = vmatprep.subr.bf16.mxu0 0
  %510 = vmatpush1.bf16.xpose.msra.mxu0 0
  %511 = vmatprep.subr.bf16.mxu0 0
  %512 = vmatpush1.bf16.xpose.msra.mxu0 0
  %513 = vmatprep.subr.bf16.mxu0 0
  %514 = vmatpush1.bf16.xpose.msra.mxu0 0
  %515 = vmatprep.subr.bf16.mxu0 0
  %516 = vmatpush1.bf16.xpose.msra.mxu0 0
  %517 = vmatprep.subr.bf16.mxu0 0
  %518 = vmatpush1.bf16.xpose.msra.mxu0 0
  %519 = vmatprep.subr.bf16.mxu0 0
  %520 = vmatpush1.bf16.xpose.msra.mxu0 0
  %521 = vmatprep.subr.bf16.mxu0 0
  %522 = vmatpush1.bf16.xpose.msra.mxu0 0
  %523 = vmatprep.subr.bf16.mxu0 0
  %524 = vmatpush1.bf16.xpose.msra.mxu0 0
  %525 = vmatprep.subr.bf16.mxu0 0
  %526 = vmatpush1.bf16.xpose.msra.mxu0 0
  %527 = vmatprep.subr.bf16.mxu0 0
  %528 = vmatpush1.bf16.xpose.msra.mxu0 0
  %529 = vmatprep.subr.bf16.mxu0 0
  %530 = vmatpush1.bf16.xpose.msra.mxu0 0
  %531 = vmatprep.subr.bf16.mxu0 0
  %532 = vmatpush1.bf16.xpose.msra.mxu0 0
  %533 = vmatprep.subr.bf16.mxu0 0
  %534 = vmatpush1.bf16.xpose.msra.mxu0 0
  %535 = vmatprep.subr.bf16.mxu0 0
  %536 = vmatpush1.bf16.xpose.msra.mxu0 0
  %537 = vmatprep.subr.bf16.mxu0 0
  %538 = vmatpush1.bf16.xpose.msra.mxu0 0
  %539 = vmatprep.mubr.bf16.mxu0 0
  %540 = vmatmul.mubr.bf16.gmra.mrb[0].mxu0 %v502
  %v541 = vpop.f32.mrb[0].mxu0
  %v542 = vadd.f32 0.0, %v541
  %v543 = vpop.f32.mrb[0].mxu0
  %v544 = vpop.f32.mrb[0].mxu0
  %v545 = vpop.f32.mrb[0].mxu0
  %546 = vdwg.mxu0
  %v547 = vmul.f32 %v492, 0.25
  %v548 = vmul.f32 %v542, 0.25
  %v549 = vadd.f32 %v547, %v145
  %v550 = vadd.f32 %v548, %v149
  %v551 = vsel %vm325, %v549, -inf
  %552 = vmax.xlane.f32.xlu0 %v551
  %v553 = vpop.xlane.xlu0 %552
  %v554 = vsel %vm325, %v550, -inf
  %555 = vmax.xlane.f32.xlu0 %v554
  %v556 = vpop.xlane.xlu0 %555
  %v557 = vsub.f32 %v549, %v553
  %v558 = vsub.f32 %v550, %v556
  %v559 = vmul.f32 %v557, 1.442695
  %v560 = vpow.pop %v559
  %v561 = vmul.f32 %v558, 1.442695
  %v562 = vpow.pop %v561
  %v563 = vsel %vm325, %v560, 0.0
  %564 = vadd.xlane.f32.xlu0 %v563
  %v565 = vpop.xlane.xlu0 %564
  %v566 = vsel %vm325, %v562, 0.0
  %567 = vadd.xlane.f32.xlu0 %v566
  %v568 = vpop.xlane.xlu0 %567
  %v569 = vrcp.pop %v565
  %v570 = vmul.f32 %v560, %v569
  %v571 = vrcp.pop %v568
  %v572 = vmul.f32 %v562, %v571
  %v573 = vpack.c.bf16 %v570, %v570
  %v574 = vpack.c.bf16 %v572, %v572
  %575 = vrot.lane.b32.xlu0 %v220, 48
  %v576 = vpop.permute.xlu0 %575
  %v578 = vsel %vm325, %v573, 0
  %v581 = vsel %vm355, %v576, 0
  %583 = vmatprep.subr.bf16.mxu0 0
  %584 = vmatpush1.bf16.msra.mxu0 %v581
  %585 = vmatprep.subr.bf16.mxu0 0
  %586 = vmatpush1.bf16.msra.mxu0 0
  %587 = vmatprep.subr.bf16.mxu0 0
  %588 = vmatpush1.bf16.msra.mxu0 0
  %589 = vmatprep.subr.bf16.mxu0 0
  %590 = vmatpush1.bf16.msra.mxu0 0
  %591 = vmatprep.subr.bf16.mxu0 0
  %592 = vmatpush1.bf16.msra.mxu0 0
  %593 = vmatprep.subr.bf16.mxu0 0
  %594 = vmatpush1.bf16.msra.mxu0 0
  %595 = vmatprep.subr.bf16.mxu0 0
  %596 = vmatpush1.bf16.msra.mxu0 0
  %597 = vmatprep.subr.bf16.mxu0 0
  %598 = vmatpush1.bf16.msra.mxu0 0
  %599 = vmatprep.subr.bf16.mxu0 0
  %600 = vmatpush1.bf16.msra.mxu0 0
  %601 = vmatprep.subr.bf16.mxu0 0
  %602 = vmatpush1.bf16.msra.mxu0 0
  %603 = vmatprep.subr.bf16.mxu0 0
  %604 = vmatpush1.bf16.msra.mxu0 0
  %605 = vmatprep.subr.bf16.mxu0 0
  %606 = vmatpush1.bf16.msra.mxu0 0
  %607 = vmatprep.subr.bf16.mxu0 0
  %608 = vmatpush1.bf16.msra.mxu0 0
  %609 = vmatprep.subr.bf16.mxu0 0
  %610 = vmatpush1.bf16.msra.mxu0 0
  %611 = vmatprep.subr.bf16.mxu0 0
  %612 = vmatpush1.bf16.msra.mxu0 0
  %613 = vmatprep.subr.bf16.mxu0 0
  %614 = vmatpush1.bf16.msra.mxu0 0
  %615 = vmatprep.mubr.bf16.mxu0 0
  %616 = vmatmul.mubr.bf16.gmra.mrb[0].mxu0 %v578
  %v617 = vpop.f32.mrb[0].mxu0
  %v618 = vadd.f32 0.0, %v617
  %v619 = vpop.f32.mrb[0].mxu0
  %v620 = vpop.f32.mrb[0].mxu0
  %v621 = vpop.f32.mrb[0].mxu0
  %622 = vdwg.mxu0
  %623 = vrot.lane.b32.xlu0 %v221, 48
  %v624 = vpop.permute.xlu0 %623
  %v626 = vsel %vm325, %v574, 0
  %v629 = vsel %vm355, %v624, 0
  %631 = vmatprep.subr.bf16.mxu0 0
  %632 = vmatpush1.bf16.msra.mxu0 %v629
  %633 = vmatprep.subr.bf16.mxu0 0
  %634 = vmatpush1.bf16.msra.mxu0 0
  %635 = vmatprep.subr.bf16.mxu0 0
  %636 = vmatpush1.bf16.msra.mxu0 0
  %637 = vmatprep.subr.bf16.mxu0 0
  %638 = vmatpush1.bf16.msra.mxu0 0
  %639 = vmatprep.subr.bf16.mxu0 0
  %640 = vmatpush1.bf16.msra.mxu0 0
  %641 = vmatprep.subr.bf16.mxu0 0
  %642 = vmatpush1.bf16.msra.mxu0 0
  %643 = vmatprep.subr.bf16.mxu0 0
  %644 = vmatpush1.bf16.msra.mxu0 0
  %645 = vmatprep.subr.bf16.mxu0 0
  %646 = vmatpush1.bf16.msra.mxu0 0
  %647 = vmatprep.subr.bf16.mxu0 0
  %648 = vmatpush1.bf16.msra.mxu0 0
  %649 = vmatprep.subr.bf16.mxu0 0
  %650 = vmatpush1.bf16.msra.mxu0 0
  %651 = vmatprep.subr.bf16.mxu0 0
  %652 = vmatpush1.bf16.msra.mxu0 0
  %653 = vmatprep.subr.bf16.mxu0 0
  %654 = vmatpush1.bf16.msra.mxu0 0
  %655 = vmatprep.subr.bf16.mxu0 0
  %656 = vmatpush1.bf16.msra.mxu0 0
  %657 = vmatprep.subr.bf16.mxu0 0
  %658 = vmatpush1.bf16.msra.mxu0 0
  %659 = vmatprep.subr.bf16.mxu0 0
  %660 = vmatpush1.bf16.msra.mxu0 0
  %661 = vmatprep.subr.bf16.mxu0 0
  %662 = vmatpush1.bf16.msra.mxu0 0
  %663 = vmatprep.mubr.bf16.mxu0 0
  %664 = vmatmul.mubr.bf16.gmra.mrb[0].mxu0 %v626
  %v665 = vpop.f32.mrb[0].mxu0
  %v666 = vadd.f32 0.0, %v665
  %v667 = vpop.f32.mrb[0].mxu0
  %v668 = vpop.f32.mrb[0].mxu0
  %v669 = vpop.f32.mrb[0].mxu0
  %670 = vdwg.mxu0
  %673 = vrot.lane.b32.xlu0 %v618, 16
  %v674 = vpop.permute.xlu0 %673
  %675 = vrot.lane.b32.xlu0 %v666, 16
  %v676 = vpop.permute.xlu0 %675
  %v679 = vsel %vm225, %v394, %v674
  %v680 = vsel %vm225, %v442, %v676
  %v681 = vpack.c.bf16 %v680, %v679
  %v682 = vld [vmem:[%s6] sm:$0xf]
  %v683 = vld [vmem:[%s6 + $0x4] sm:$0xf]
  %v684 = vld [vmem:[%s6 + $0x8] sm:$0xf]
  %v685 = vld [vmem:[%s6 + $0xc] sm:$0xf]
  %v686 = vld [vmem:[%s7] sm:$0x1]
  %v688 = vlaneseq
  %v689 = vshrl.u32 %v688, 7
  %v690 = vsub.s32 0, %v689
  %v691 = vrot.slane %v686, %v690
  %v697 = vunpack.c.l.b16 %v682
  %v698 = vunpack.c.l.b16 %v683
  %v699 = vunpack.c.l.b16 %v684
  %v700 = vunpack.c.l.b16 %v685
  %v701 = vpack.c.b16 %v698, %v697
  %v702 = vpack.c.b16 %v700, %v699
  %v706 = vsel %vm72, %v681, 0
  %708 = vmatprep.subr.bf16.mxu0 0
  %709 = vmatpush1.bf16.msra.mxu0 %v701
  %710 = vmatprep.subr.bf16.mxu0 0
  %711 = vmatpush1.bf16.msra.mxu0 %v702
  %712 = vmatprep.subr.bf16.mxu0 0
  %713 = vmatpush1.bf16.msra.mxu0 0
  %714 = vmatprep.subr.bf16.mxu0 0
  %715 = vmatpush1.bf16.msra.mxu0 0
  %716 = vmatprep.subr.bf16.mxu0 0
  %717 = vmatpush1.bf16.msra.mxu0 0
  %718 = vmatprep.subr.bf16.mxu0 0
  %719 = vmatpush1.bf16.msra.mxu0 0
  %720 = vmatprep.subr.bf16.mxu0 0
  %721 = vmatpush1.bf16.msra.mxu0 0
  %722 = vmatprep.subr.bf16.mxu0 0
  %723 = vmatpush1.bf16.msra.mxu0 0
  %724 = vmatprep.subr.bf16.mxu0 0
  %725 = vmatpush1.bf16.msra.mxu0 0
  %726 = vmatprep.subr.bf16.mxu0 0
  %727 = vmatpush1.bf16.msra.mxu0 0
  %728 = vmatprep.subr.bf16.mxu0 0
  %729 = vmatpush1.bf16.msra.mxu0 0
  %730 = vmatprep.subr.bf16.mxu0 0
  %731 = vmatpush1.bf16.msra.mxu0 0
  %732 = vmatprep.subr.bf16.mxu0 0
  %733 = vmatpush1.bf16.msra.mxu0 0
  %734 = vmatprep.subr.bf16.mxu0 0
  %735 = vmatpush1.bf16.msra.mxu0 0
  %736 = vmatprep.subr.bf16.mxu0 0
  %737 = vmatpush1.bf16.msra.mxu0 0
  %738 = vmatprep.subr.bf16.mxu0 0
  %739 = vmatpush1.bf16.msra.mxu0 0
  %740 = vmatprep.mubr.bf16.mxu0 0
  %741 = vmatmul.mubr.bf16.gmra.mrb[0].mxu0 %v706
  %v742 = vpop.f32.mrb[0].mxu0
  %v743 = vadd.f32 %v691, %v742
  %v744 = vpop.f32.mrb[0].mxu0
  %v745 = vpop.f32.mrb[0].mxu0
  %v746 = vadd.f32 %v691, %v745
  %v747 = vpop.f32.mrb[0].mxu0
  %748 = vdwg.mxu0
  %v749 = vadd.f32 %v743, %v114
  %v750 = vadd.f32 %v746, %v115
  %v751 = vld [vmem:[%s8] sm:$0x1]
  %v752 = vld [vmem:[%s9] sm:$0x1]
  %v753 = vsel %vm72, %v749, 0.0
  %754 = vadd.xlane.f32.xlu0 %v753
  %v755 = vpop.xlane.xlu0 %754
  %v756 = vsel %vm72, %v750, 0.0
  %757 = vadd.xlane.f32.xlu0 %v756
  %v758 = vpop.xlane.xlu0 %757
  %v759 = vmul.f32 %v755, %v79
  %v760 = vmul.f32 %v758, %v79
  %v761 = vsub.f32 %v749, %v759
  %v762 = vsub.f32 %v750, %v760
  %v763 = vmul.f32 %v761, %v761
  %v764 = vmul.f32 %v762, %v762
  %v765 = vsel %vm72, %v763, 0.0
  %766 = vadd.xlane.f32.xlu0 %v765
  %v767 = vpop.xlane.xlu0 %766
  %v768 = vsel %vm72, %v764, 0.0
  %769 = vadd.xlane.f32.xlu0 %v768
  %v770 = vpop.xlane.xlu0 %769
  %v771 = vmul.f32 %v767, %v79
  %v772 = vmul.f32 %v770, %v79
  %v773 = vadd.f32 %v771, 1e-12
  %v774 = vadd.f32 %v772, 1e-12
  %v775 = vrsqrt.pop %v773
  %v776 = vrsqrt.pop %v774
  %v777 = vmul.f32 %v761, %v775
  %v778 = vmul.f32 %v762, %v776
  %v780 = vlaneseq
  %v781 = vshrl.u32 %v780, 7
  %v782 = vsub.s32 0, %v781
  %v783 = vrot.slane %v751, %v782
  %v785 = vmul.f32 %v777, %v783
  %v786 = vmul.f32 %v778, %v783
  %v788 = vlaneseq
  %v789 = vshrl.u32 %v788, 7
  %v790 = vsub.s32 0, %v789
  %v791 = vrot.slane %v752, %v790
  %v793 = vadd.f32 %v785, %v791
  %v794 = vadd.f32 %v786, %v791
  %v795 = vpack.c.bf16 %v794, %v793
  %v796 = vld [vmem:[%s10] sm:$0xf]
  %v797 = vld [vmem:[%s10 + $0x4] sm:$0xf]
  %v798 = vld [vmem:[%s10 + $0x8] sm:$0xf]
  %v799 = vld [vmem:[%s10 + $0xc] sm:$0xf]
  %v800 = vld [vmem:[%s11] sm:$0x1]
  %v802 = vlaneseq
  %v803 = vshrl.u32 %v802, 7
  %v804 = vsub.s32 0, %v803
  %v805 = vrot.slane %v800, %v804
  %v811 = vunpack.c.l.b16 %v796
  %v812 = vunpack.c.l.b16 %v797
  %v813 = vunpack.c.l.b16 %v798
  %v814 = vunpack.c.l.b16 %v799
  %v815 = vpack.c.b16 %v812, %v811
  %v816 = vpack.c.b16 %v814, %v813
  %v820 = vsel %vm72, %v795, 0
  %822 = vmatprep.subr.bf16.mxu0 0
  %823 = vmatpush1.bf16.msra.mxu0 %v815
  %824 = vmatprep.subr.bf16.mxu0 0
  %825 = vmatpush1.bf16.msra.mxu0 %v816
  %826 = vmatprep.subr.bf16.mxu0 0
  %827 = vmatpush1.bf16.msra.mxu0 0
  %828 = vmatprep.subr.bf16.mxu0 0
  %829 = vmatpush1.bf16.msra.mxu0 0
  %830 = vmatprep.subr.bf16.mxu0 0
  %831 = vmatpush1.bf16.msra.mxu0 0
  %832 = vmatprep.subr.bf16.mxu0 0
  %833 = vmatpush1.bf16.msra.mxu0 0
  %834 = vmatprep.subr.bf16.mxu0 0
  %835 = vmatpush1.bf16.msra.mxu0 0
  %836 = vmatprep.subr.bf16.mxu0 0
  %837 = vmatpush1.bf16.msra.mxu0 0
  %838 = vmatprep.subr.bf16.mxu0 0
  %839 = vmatpush1.bf16.msra.mxu0 0
  %840 = vmatprep.subr.bf16.mxu0 0
  %841 = vmatpush1.bf16.msra.mxu0 0
  %842 = vmatprep.subr.bf16.mxu0 0
  %843 = vmatpush1.bf16.msra.mxu0 0
  %844 = vmatprep.subr.bf16.mxu0 0
  %845 = vmatpush1.bf16.msra.mxu0 0
  %846 = vmatprep.subr.bf16.mxu0 0
  %847 = vmatpush1.bf16.msra.mxu0 0
  %848 = vmatprep.subr.bf16.mxu0 0
  %849 = vmatpush1.bf16.msra.mxu0 0
  %850 = vmatprep.subr.bf16.mxu0 0
  %851 = vmatpush1.bf16.msra.mxu0 0
  %852 = vmatprep.subr.bf16.mxu0 0
  %853 = vmatpush1.bf16.msra.mxu0 0
  %854 = vmatprep.mubr.bf16.mxu0 0
  %855 = vmatmul.mubr.bf16.gmra.mrb[0].mxu0 %v820
  %v856 = vpop.f32.mrb[0].mxu0
  %v857 = vadd.f32 %v805, %v856
  %v858 = vpop.f32.mrb[0].mxu0
  %v859 = vpop.f32.mrb[0].mxu0
  %v860 = vadd.f32 %v805, %v859
  %v861 = vpop.f32.mrb[0].mxu0
  %862 = vdwg.mxu0
  %v863 = vmul.f32 %v857, 0.5
  %v864 = vmul.f32 %v860, 0.5
  %v865 = vmul.f32 %v857, 0.044715
  %v866 = vmul.f32 %v860, 0.044715
  %v867 = vmul.f32 %v865, %v857
  %v868 = vmul.f32 %v866, %v860
  %v869 = vmul.f32 %v867, %v857
  %v870 = vmul.f32 %v868, %v860
  %v871 = vadd.f32 %v857, %v869
  %v872 = vadd.f32 %v860, %v870
  %v873 = vmul.f32 %v871, 0.7978846
  %v874 = vmul.f32 %v872, 0.7978846
  %v875 = vtanh.pop %v873
  %v876 = vtanh.pop %v874
  %v877 = vadd.f32 %v875, 1.0
  %v878 = vadd.f32 %v876, 1.0
  %v879 = vmul.f32 %v863, %v877
  %v880 = vmul.f32 %v864, %v878
  %v881 = vpack.c.bf16 %v880, %v879
  %v882 = vld [vmem:[%s12] sm:$0xf]
  %v883 = vld [vmem:[%s12 + $0x4] sm:$0xf]
  %v884 = vld [vmem:[%s12 + $0x8] sm:$0xf]
  %v885 = vld [vmem:[%s12 + $0xc] sm:$0xf]
  %v886 = vld [vmem:[%s12 + $0x10] sm:$0xf]
  %v887 = vld [vmem:[%s12 + $0x14] sm:$0xf]
  %v888 = vld [vmem:[%s12 + $0x18] sm:$0xf]
  %v889 = vld [vmem:[%s12 + $0x1c] sm:$0xf]
  %v890 = vld [vmem:[%s13] sm:$0x1]
  %v892 = vlaneseq
  %v893 = vshrl.u32 %v892, 7
  %v894 = vsub.s32 0, %v893
  %v895 = vrot.slane %v890, %v894
  %v905 = vunpack.c.l.b16 %v882
  %v906 = vunpack.c.l.b16 %v883
  %v907 = vunpack.c.l.b16 %v884
  %v908 = vunpack.c.l.b16 %v885
  %v909 = vunpack.c.l.b16 %v886
  %v910 = vunpack.c.l.b16 %v887
  %v911 = vunpack.c.l.b16 %v888
  %v912 = vunpack.c.l.b16 %v889
  %v913 = vpack.c.b16 %v906, %v905
  %v914 = vpack.c.b16 %v908, %v907
  %v915 = vpack.c.b16 %v910, %v909
  %v916 = vpack.c.b16 %v912, %v911
  %vm921 = vcmask 523264
  %v923 = vsel %vm921, %v881, 0
  %925 = vmatprep.subr.bf16.mxu0 0
  %926 = vmatpush1.bf16.msra.mxu0 %v913
  %927 = vmatprep.subr.bf16.mxu0 0
  %928 = vmatpush1.bf16.msra.mxu0 %v914
  %929 = vmatprep.subr.bf16.mxu0 0
  %930 = vmatpush1.bf16.msra.mxu0 %v915
  %931 = vmatprep.subr.bf16.mxu0 0
  %932 = vmatpush1.bf16.msra.mxu0 %v916
  %933 = vmatprep.subr.bf16.mxu0 0
  %934 = vmatpush1.bf16.msra.mxu0 0
  %935 = vmatprep.subr.bf16.mxu0 0
  %936 = vmatpush1.bf16.msra.mxu0 0
  %937 = vmatprep.subr.bf16.mxu0 0
  %938 = vmatpush1.bf16.msra.mxu0 0
  %939 = vmatprep.subr.bf16.mxu0 0
  %940 = vmatpush1.bf16.msra.mxu0 0
  %941 = vmatprep.subr.bf16.mxu0 0
  %942 = vmatpush1.bf16.msra.mxu0 0
  %943 = vmatprep.subr.bf16.mxu0 0
  %944 = vmatpush1.bf16.msra.mxu0 0
  %945 = vmatprep.subr.bf16.mxu0 0
  %946 = vmatpush1.bf16.msra.mxu0 0
  %947 = vmatprep.subr.bf16.mxu0 0
  %948 = vmatpush1.bf16.msra.mxu0 0
  %949 = vmatprep.subr.bf16.mxu0 0
  %950 = vmatpush1.bf16.msra.mxu0 0
  %951 = vmatprep.subr.bf16.mxu0 0
  %952 = vmatpush1.bf16.msra.mxu0 0
  %953 = vmatprep.subr.bf16.mxu0 0
  %954 = vmatpush1.bf16.msra.mxu0 0
  %955 = vmatprep.subr.bf16.mxu0 0
  %956 = vmatpush1.bf16.msra.mxu0 0
  %957 = vmatprep.mubr.bf16.mxu0 0
  %958 = vmatmul.mubr.bf16.gmra.mrb[0].mxu0 %v923
  %v959 = vpop.f32.mrb[0].mxu0
  %v960 = vadd.f32 %v895, %v959
  %v961 = vpop.f32.mrb[0].mxu0
  %v962 = vpop.f32.mrb[0].mxu0
  %v963 = vadd.f32 %v895, %v962
  %v964 = vpop.f32.mrb[0].mxu0
  %965 = vdwg.mxu0
  %v966 = vadd.f32 %v960, %v793
  %v967 = vadd.f32 %v963, %v794
  %v968 = vld [vmem:[%s14] sm:$0x1]
  %v969 = vld [vmem:[%s15] sm:$0x1]
  %v970 = vsel %vm72, %v966, 0.0
  %971 = vadd.xlane.f32.xlu0 %v970
  %v972 = vpop.xlane.xlu0 %971
  %v973 = vsel %vm72, %v967, 0.0
  %974 = vadd.xlane.f32.xlu0 %v973
  %v975 = vpop.xlane.xlu0 %974
  %v976 = vmul.f32 %v972, %v79
  %v977 = vmul.f32 %v975, %v79
  %v978 = vsub.f32 %v966, %v976
  %v979 = vsub.f32 %v967, %v977
  %v980 = vmul.f32 %v978, %v978
  %v981 = vmul.f32 %v979, %v979
  %v982 = vsel %vm72, %v980, 0.0
  %983 = vadd.xlane.f32.xlu0 %v982
  %v984 = vpop.xlane.xlu0 %983
  %v985 = vsel %vm72, %v981, 0.0
  %986 = vadd.xlane.f32.xlu0 %v985
  %v987 = vpop.xlane.xlu0 %986
  %v988 = vmul.f32 %v984, %v79
  %v989 = vmul.f32 %v987, %v79
  %v990 = vadd.f32 %v988, 1e-12
  %v991 = vadd.f32 %v989, 1e-12
  %v992 = vrsqrt.pop %v990
  %v993 = vrsqrt.pop %v991
  %v994 = vmul.f32 %v978, %v992
  %v995 = vmul.f32 %v979, %v993
  %v997 = vlaneseq
  %v998 = vshrl.u32 %v997, 7
  %v999 = vsub.s32 0, %v998
  %v1000 = vrot.slane %v968, %v999
  %v1002 = vmul.f32 %v994, %v1000
  %v1003 = vmul.f32 %v995, %v1000
  %v1005 = vlaneseq
  %v1006 = vshrl.u32 %v1005, 7
  %v1007 = vsub.s32 0, %v1006
  %v1008 = vrot.slane %v969, %v1007
  %v1010 = vadd.f32 %v1002, %v1008
  %v1011 = vadd.f32 %v1003, %v1008
  %v1012 = vpack.c.bf16 %v1011, %v1010
  %s1013 = scalar_lea.vmem %s4, 16
  %v1014 = vld [vmem:[%s1013] sm:$0xf]
  %v1015 = vld [vmem:[%s1013 + $0x4] sm:$0xf]
  %v1016 = vld [vmem:[%s1013 + $0x8] sm:$0xf]
  %v1017 = vld [vmem:[%s1013 + $0xc] sm:$0xf]
  %s1018 = scalar_lea.vmem %s5, 1
  %v1019 = vld [vmem:[%s1018] sm:$0x1]
  %v1021 = vlaneseq
  %v1022 = vshrl.u32 %v1021, 7
  %v1023 = vsub.s32 0, %v1022
  %v1024 = vrot.slane %v1019, %v1023
  %v1030 = vunpack.c.l.b16 %v1014
  %v1031 = vunpack.c.l.b16 %v1015
  %v1032 = vunpack.c.l.b16 %v1016
  %v1033 = vunpack.c.l.b16 %v1017
  %v1034 = vpack.c.b16 %v1031, %v1030
  %v1035 = vpack.c.b16 %v1033, %v1032
  %v1039 = vsel %vm72, %v1012, 0
  %1041 = vmatprep.subr.bf16.mxu0 0
  %1042 = vmatpush1.bf16.msra.mxu0 %v1034
  %1043 = vmatprep.subr.bf16.mxu0 0
  %1044 = vmatpush1.bf16.msra.mxu0 %v1035
  %1045 = vmatprep.subr.bf16.mxu0 0
  %1046 = vmatpush1.bf16.msra.mxu0 0
  %1047 = vmatprep.subr.bf16.mxu0 0
  %1048 = vmatpush1.bf16.msra.mxu0 0
  %1049 = vmatprep.subr.bf16.mxu0 0
  %1050 = vmatpush1.bf16.msra.mxu0 0
  %1051 = vmatprep.subr.bf16.mxu0 0
  %1052 = vmatpush1.bf16.msra.mxu0 0
  %1053 = vmatprep.subr.bf16.mxu0 0
  %1054 = vmatpush1.bf16.msra.mxu0 0
  %1055 = vmatprep.subr.bf16.mxu0 0
  %1056 = vmatpush1.bf16.msra.mxu0 0
  %1057 = vmatprep.subr.bf16.mxu0 0
  %1058 = vmatpush1.bf16.msra.mxu0 0
  %1059 = vmatprep.subr.bf16.mxu0 0
  %1060 = vmatpush1.bf16.msra.mxu0 0
  %1061 = vmatprep.subr.bf16.mxu0 0
  %1062 = vmatpush1.bf16.msra.mxu0 0
  %1063 = vmatprep.subr.bf16.mxu0 0
  %1064 = vmatpush1.bf16.msra.mxu0 0
  %1065 = vmatprep.subr.bf16.mxu0 0
  %1066 = vmatpush1.bf16.msra.mxu0 0
  %1067 = vmatprep.subr.bf16.mxu0 0
  %1068 = vmatpush1.bf16.msra.mxu0 0
  %1069 = vmatprep.subr.bf16.mxu0 0
  %1070 = vmatpush1.bf16.msra.mxu0 0
  %1071 = vmatprep.subr.bf16.mxu0 0
  %1072 = vmatpush1.bf16.msra.mxu0 0
  %1073 = vmatprep.mubr.bf16.mxu0 0
  %1074 = vmatmul.mubr.bf16.gmra.mrb[0].mxu0 %v1039
  %v1075 = vpop.f32.mrb[0].mxu0
  %v1076 = vadd.f32 %v1024, %v1075
  %v1077 = vpop.f32.mrb[0].mxu0
  %v1078 = vpop.f32.mrb[0].mxu0
  %v1079 = vadd.f32 %v1024, %v1078
  %v1080 = vpop.f32.mrb[0].mxu0
  %1081 = vdwg.mxu0
  %v1082 = vpack.c.bf16 %v1076, %v1076
  %v1083 = vpack.c.bf16 %v1079, %v1079
  %1085 = vrot.lane.b32.xlu0 %v1082, 96
  %v1086 = vpop.permute.xlu0 %1085
  %v1088 = vsel %vm225, %v1082, 0
  %v1091 = vsel %vm225, %v1086, 0
  %1093 = vmatprep.subr.bf16.mxu0 0
  %1094 = vmatpush1.bf16.xpose.msra.mxu0 %v1091
  %1095 = vmatprep.subr.bf16.mxu0 0
  %1096 = vmatpush1.bf16.xpose.msra.mxu0 0
  %1097 = vmatprep.subr.bf16.mxu0 0
  %1098 = vmatpush1.bf16.xpose.msra.mxu0 0
  %1099 = vmatprep.subr.bf16.mxu0 0
  %1100 = vmatpush1.bf16.xpose.msra.mxu0 0
  %1101 = vmatprep.subr.bf16.mxu0 0
  %1102 = vmatpush1.bf16.xpose.msra.mxu0 0
  %1103 = vmatprep.subr.bf16.mxu0 0
  %1104 = vmatpush1.bf16.xpose.msra.mxu0 0
  %1105 = vmatprep.subr.bf16.mxu0 0
  %1106 = vmatpush1.bf16.xpose.msra.mxu0 0
  %1107 = vmatprep.subr.bf16.mxu0 0
  %1108 = vmatpush1.bf16.xpose.msra.mxu0 0
  %1109 = vmatprep.subr.bf16.mxu0 0
  %1110 = vmatpush1.bf16.xpose.msra.mxu0 0
  %1111 = vmatprep.subr.bf16.mxu0 0
  %1112 = vmatpush1.bf16.xpose.msra.mxu0 0
  %1113 = vmatprep.subr.bf16.mxu0 0
  %1114 = vmatpush1.bf16.xpose.msra.mxu0 0
  %1115 = vmatprep.subr.bf16.mxu0 0
  %1116 = vmatpush1.bf16.xpose.msra.mxu0 0
  %1117 = vmatprep.subr.bf16.mxu0 0
  %1118 = vmatpush1.bf16.xpose.msra.mxu0 0
  %1119 = vmatprep.subr.bf16.mxu0 0
  %1120 = vmatpush1.bf16.xpose.msra.mxu0 0
  %1121 = vmatprep.subr.bf16.mxu0 0
  %1122 = vmatpush1.bf16.xpose.msra.mxu0 0
  %1123 = vmatprep.subr.bf16.mxu0 0
  %1124 = vmatpush1.bf16.xpose.msra.mxu0 0
  %1125 = vmatprep.mubr.bf16.mxu0 0
  %1126 = vmatmul.mubr.bf16.gmra.mrb[0].mxu0 %v1088
  %v1127 = vpop.f32.mrb[0].mxu0
  %v1128 = vadd.f32 0.0, %v1127
  %v1129 = vpop.f32.mrb[0].mxu0
  %v1130 = vpop.f32.mrb[0].mxu0
  %v1131 = vpop.f32.mrb[0].mxu0
  %1132 = vdwg.mxu0
  %1134 = vrot.lane.b32.xlu0 %v1083, 96
  %v1135 = vpop.permute.xlu0 %1134
  %v1137 = vsel %vm225, %v1083, 0
  %v1140 = vsel %vm225, %v1135, 0
  %1142 = vmatprep.subr.bf16.mxu0 0
  %1143 = vmatpush1.bf16.xpose.msra.mxu0 %v1140
  %1144 = vmatprep.subr.bf16.mxu0 0
  %1145 = vmatpush1.bf16.xpose.msra.mxu0 0
  %1146 = vmatprep.subr.bf16.mxu0 0
  %1147 = vmatpush1.bf16.xpose.msra.mxu0 0
  %1148 = vmatprep.subr.bf16.mxu0 0
  %1149 = vmatpush1.bf16.xpose.msra.mxu0 0
  %1150 = vmatprep.subr.bf16.mxu0 0
  %1151 = vmatpush1.bf16.xpose.msra.mxu0 0
  %1152 = vmatprep.subr.bf16.mxu0 0
  %1153 = vmatpush1.bf16.xpose.msra.mxu0 0
  %1154 = vmatprep.subr.bf16.mxu0 0
  %1155 = vmatpush1.bf16.xpose.msra.mxu0 0
  %1156 = vmatprep.subr.bf16.mxu0 0
  %1157 = vmatpush1.bf16.xpose.msra.mxu0 0
  %1158 = vmatprep.subr.bf16.mxu0 0
  %1159 = vmatpush1.bf16.xpose.msra.mxu0 0
  %1160 = vmatprep.subr.bf16.mxu0 0
  %1161 = vmatpush1.bf16.xpose.msra.mxu0 0
  %1162 = vmatprep.subr.bf16.mxu0 0
  %1163 = vmatpush1.bf16.xpose.msra.mxu0 0
  %1164 = vmatprep.subr.bf16.mxu0 0
  %1165 = vmatpush1.bf16.xpose.msra.mxu0 0
  %1166 = vmatprep.subr.bf16.mxu0 0
  %1167 = vmatpush1.bf16.xpose.msra.mxu0 0
  %1168 = vmatprep.subr.bf16.mxu0 0
  %1169 = vmatpush1.bf16.xpose.msra.mxu0 0
  %1170 = vmatprep.subr.bf16.mxu0 0
  %1171 = vmatpush1.bf16.xpose.msra.mxu0 0
  %1172 = vmatprep.subr.bf16.mxu0 0
  %1173 = vmatpush1.bf16.xpose.msra.mxu0 0
  %1174 = vmatprep.mubr.bf16.mxu0 0
  %1175 = vmatmul.mubr.bf16.gmra.mrb[0].mxu0 %v1137
  %v1176 = vpop.f32.mrb[0].mxu0
  %v1177 = vadd.f32 0.0, %v1176
  %v1178 = vpop.f32.mrb[0].mxu0
  %v1179 = vpop.f32.mrb[0].mxu0
  %v1180 = vpop.f32.mrb[0].mxu0
  %1181 = vdwg.mxu0
  %v1182 = vmul.f32 %v1128, 0.25
  %v1183 = vmul.f32 %v1177, 0.25
  %v1184 = vadd.f32 %v1182, %v145
  %v1185 = vadd.f32 %v1183, %v149
  %v1186 = vsel %vm325, %v1184, -inf
  %1187 = vmax.xlane.f32.xlu0 %v1186
  %v1188 = vpop.xlane.xlu0 %1187
  %v1189 = vsel %vm325, %v1185, -inf
  %1190 = vmax.xlane.f32.xlu0 %v1189
  %v1191 = vpop.xlane.xlu0 %1190
  %v1192 = vsub.f32 %v1184, %v1188
  %v1193 = vsub.f32 %v1185, %v1191
  %v1194 = vmul.f32 %v1192, 1.442695
  %v1195 = vpow.pop %v1194
  %v1196 = vmul.f32 %v1193, 1.442695
  %v1197 = vpow.pop %v1196
  %v1198 = vsel %vm325, %v1195, 0.0
  %1199 = vadd.xlane.f32.xlu0 %v1198
  %v1200 = vpop.xlane.xlu0 %1199
  %v1201 = vsel %vm325, %v1197, 0.0
  %1202 = vadd.xlane.f32.xlu0 %v1201
  %v1203 = vpop.xlane.xlu0 %1202
  %v1204 = vrcp.pop %v1200
  %v1205 = vmul.f32 %v1195, %v1204
  %v1206 = vrcp.pop %v1203
  %v1207 = vmul.f32 %v1197, %v1206
  %v1208 = vpack.c.bf16 %v1205, %v1205
  %v1209 = vpack.c.bf16 %v1207, %v1207
  %1210 = vrot.lane.b32.xlu0 %v1082, 64
  %v1211 = vpop.permute.xlu0 %1210
  %v1213 = vsel %vm325, %v1208, 0
  %v1216 = vsel %vm355, %v1211, 0
  %1218 = vmatprep.subr.bf16.mxu0 0
  %1219 = vmatpush1.bf16.msra.mxu0 %v1216
  %1220 = vmatprep.subr.bf16.mxu0 0
  %1221 = vmatpush1.bf16.msra.mxu0 0
  %1222 = vmatprep.subr.bf16.mxu0 0
  %1223 = vmatpush1.bf16.msra.mxu0 0
  %1224 = vmatprep.subr.bf16.mxu0 0
  %1225 = vmatpush1.bf16.msra.mxu0 0
  %1226 = vmatprep.subr.bf16.mxu0 0
  %1227 = vmatpush1.bf16.msra.mxu0 0
  %1228 = vmatprep.subr.bf16.mxu0 0
  %1229 = vmatpush1.bf16.msra.mxu0 0
  %1230 = vmatprep.subr.bf16.mxu0 0
  %1231 = vmatpush1.bf16.msra.mxu0 0
  %1232 = vmatprep.subr.bf16.mxu0 0
  %1233 = vmatpush1.bf16.msra.mxu0 0
  %1234 = vmatprep.subr.bf16.mxu0 0
  %1235 = vmatpush1.bf16.msra.mxu0 0
  %1236 = vmatprep.subr.bf16.mxu0 0
  %1237 = vmatpush1.bf16.msra.mxu0 0
  %1238 = vmatprep.subr.bf16.mxu0 0
  %1239 = vmatpush1.bf16.msra.mxu0 0
  %1240 = vmatprep.subr.bf16.mxu0 0
  %1241 = vmatpush1.bf16.msra.mxu0 0
  %1242 = vmatprep.subr.bf16.mxu0 0
  %1243 = vmatpush1.bf16.msra.mxu0 0
  %1244 = vmatprep.subr.bf16.mxu0 0
  %1245 = vmatpush1.bf16.msra.mxu0 0
  %1246 = vmatprep.subr.bf16.mxu0 0
  %1247 = vmatpush1.bf16.msra.mxu0 0
  %1248 = vmatprep.subr.bf16.mxu0 0
  %1249 = vmatpush1.bf16.msra.mxu0 0
  %1250 = vmatprep.mubr.bf16.mxu0 0
  %1251 = vmatmul.mubr.bf16.gmra.mrb[0].mxu0 %v1213
  %v1252 = vpop.f32.mrb[0].mxu0
  %v1253 = vadd.f32 0.0, %v1252
  %v1254 = vpop.f32.mrb[0].mxu0
  %v1255 = vpop.f32.mrb[0].mxu0
  %v1256 = vpop.f32.mrb[0].mxu0
  %1257 = vdwg.mxu0
  %1258 = vrot.lane.b32.xlu0 %v1083, 64
  %v1259 = vpop.permute.xlu0 %1258
  %v1261 = vsel %vm325, %v1209, 0
  %v1264 = vsel %vm355, %v1259, 0
  %1266 = vmatprep.subr.bf16.mxu0 0
  %1267 = vmatpush1.bf16.msra.mxu0 %v1264
  %1268 = vmatprep.subr.bf16.mxu0 0
  %1269 = vmatpush1.bf16.msra.mxu0 0
  %1270 = vmatprep.subr.bf16.mxu0 0
  %1271 = vmatpush1.bf16.msra.mxu0 0
  %1272 = vmatprep.subr.bf16.mxu0 0
  %1273 = vmatpush1.bf16.msra.mxu0 0
  %1274 = vmatprep.subr.bf16.mxu0 0
  %1275 = vmatpush1.bf16.msra.mxu0 0
  %1276 = vmatprep.subr.bf16.mxu0 0
  %1277 = vmatpush1.bf16.msra.mxu0 0
  %1278 = vmatprep.subr.bf16.mxu0 0
  %1279 = vmatpush1.bf16.msra.mxu0 0
  %1280 = vmatprep.subr.bf16.mxu0 0
  %1281 = vmatpush1.bf16.msra.mxu0 0
  %1282 = vmatprep.subr.bf16.mxu0 0
  %1283 = vmatpush1.bf16.msra.mxu0 0
  %1284 = vmatprep.subr.bf16.mxu0 0
  %1285 = vmatpush1.bf16.msra.mxu0 0
  %1286 = vmatprep.subr.bf16.mxu0 0
  %1287 = vmatpush1.bf16.msra.mxu0 0
  %1288 = vmatprep.subr.bf16.mxu0 0
  %1289 = vmatpush1.bf16.msra.mxu0 0
  %1290 = vmatprep.subr.bf16.mxu0 0
  %1291 = vmatpush1.bf16.msra.mxu0 0
  %1292 = vmatprep.subr.bf16.mxu0 0
  %1293 = vmatpush1.bf16.msra.mxu0 0
  %1294 = vmatprep.subr.bf16.mxu0 0
  %1295 = vmatpush1.bf16.msra.mxu0 0
  %1296 = vmatprep.subr.bf16.mxu0 0
  %1297 = vmatpush1.bf16.msra.mxu0 0
  %1298 = vmatprep.mubr.bf16.mxu0 0
  %1299 = vmatmul.mubr.bf16.gmra.mrb[0].mxu0 %v1261
  %v1300 = vpop.f32.mrb[0].mxu0
  %v1301 = vadd.f32 0.0, %v1300
  %v1302 = vpop.f32.mrb[0].mxu0
  %v1303 = vpop.f32.mrb[0].mxu0
  %v1304 = vpop.f32.mrb[0].mxu0
  %1305 = vdwg.mxu0
  %1306 = vrot.lane.b32.xlu0 %v1082, 112
  %v1307 = vpop.permute.xlu0 %1306
  %1308 = vrot.lane.b32.xlu0 %v1082, 80
  %v1309 = vpop.permute.xlu0 %1308
  %v1311 = vsel %vm225, %v1307, 0
  %v1314 = vsel %vm225, %v1309, 0
  %1316 = vmatprep.subr.bf16.mxu0 0
  %1317 = vmatpush1.bf16.xpose.msra.mxu0 %v1314
  %1318 = vmatprep.subr.bf16.mxu0 0
  %1319 = vmatpush1.bf16.xpose.msra.mxu0 0
  %1320 = vmatprep.subr.bf16.mxu0 0
  %1321 = vmatpush1.bf16.xpose.msra.mxu0 0
  %1322 = vmatprep.subr.bf16.mxu0 0
  %1323 = vmatpush1.bf16.xpose.msra.mxu0 0
  %1324 = vmatprep.subr.bf16.mxu0 0
  %1325 = vmatpush1.bf16.xpose.msra.mxu0 0
  %1326 = vmatprep.subr.bf16.mxu0 0
  %1327 = vmatpush1.bf16.xpose.msra.mxu0 0
  %1328 = vmatprep.subr.bf16.mxu0 0
  %1329 = vmatpush1.bf16.xpose.msra.mxu0 0
  %1330 = vmatprep.subr.bf16.mxu0 0
  %1331 = vmatpush1.bf16.xpose.msra.mxu0 0
  %1332 = vmatprep.subr.bf16.mxu0 0
  %1333 = vmatpush1.bf16.xpose.msra.mxu0 0
  %1334 = vmatprep.subr.bf16.mxu0 0
  %1335 = vmatpush1.bf16.xpose.msra.mxu0 0
  %1336 = vmatprep.subr.bf16.mxu0 0
  %1337 = vmatpush1.bf16.xpose.msra.mxu0 0
  %1338 = vmatprep.subr.bf16.mxu0 0
  %1339 = vmatpush1.bf16.xpose.msra.mxu0 0
  %1340 = vmatprep.subr.bf16.mxu0 0
  %1341 = vmatpush1.bf16.xpose.msra.mxu0 0
  %1342 = vmatprep.subr.bf16.mxu0 0
  %1343 = vmatpush1.bf16.xpose.msra.mxu0 0
  %1344 = vmatprep.subr.bf16.mxu0 0
  %1345 = vmatpush1.bf16.xpose.msra.mxu0 0
  %1346 = vmatprep.subr.bf16.mxu0 0
  %1347 = vmatpush1.bf16.xpose.msra.mxu0 0
  %1348 = vmatprep.mubr.bf16.mxu0 0
  %1349 = vmatmul.mubr.bf16.gmra.mrb[0].mxu0 %v1311
  %v1350 = vpop.f32.mrb[0].mxu0
  %v1351 = vadd.f32 0.0, %v1350
  %v1352 = vpop.f32.mrb[0].mxu0
  %v1353 = vpop.f32.mrb[0].mxu0
  %v1354 = vpop.f32.mrb[0].mxu0
  %1355 = vdwg.mxu0
  %1356 = vrot.lane.b32.xlu0 %v1083, 112
  %v1357 = vpop.permute.xlu0 %1356
  %1358 = vrot.lane.b32.xlu0 %v1083, 80
  %v1359 = vpop.permute.xlu0 %1358
  %v1361 = vsel %vm225, %v1357, 0
  %v1364 = vsel %vm225, %v1359, 0
  %1366 = vmatprep.subr.bf16.mxu0 0
  %1367 = vmatpush1.bf16.xpose.msra.mxu0 %v1364
  %1368 = vmatprep.subr.bf16.mxu0 0
  %1369 = vmatpush1.bf16.xpose.msra.mxu0 0
  %1370 = vmatprep.subr.bf16.mxu0 0
  %1371 = vmatpush1.bf16.xpose.msra.mxu0 0
  %1372 = vmatprep.subr.bf16.mxu0 0
  %1373 = vmatpush1.bf16.xpose.msra.mxu0 0
  %1374 = vmatprep.subr.bf16.mxu0 0
  %1375 = vmatpush1.bf16.xpose.msra.mxu0 0
  %1376 = vmatprep.subr.bf16.mxu0 0
  %1377 = vmatpush1.bf16.xpose.msra.mxu0 0
  %1378 = vmatprep.subr.bf16.mxu0 0
  %1379 = vmatpush1.bf16.xpose.msra.mxu0 0
  %1380 = vmatprep.subr.bf16.mxu0 0
  %1381 = vmatpush1.bf16.xpose.msra.mxu0 0
  %1382 = vmatprep.subr.bf16.mxu0 0
  %1383 = vmatpush1.bf16.xpose.msra.mxu0 0
  %1384 = vmatprep.subr.bf16.mxu0 0
  %1385 = vmatpush1.bf16.xpose.msra.mxu0 0
  %1386 = vmatprep.subr.bf16.mxu0 0
  %1387 = vmatpush1.bf16.xpose.msra.mxu0 0
  %1388 = vmatprep.subr.bf16.mxu0 0
  %1389 = vmatpush1.bf16.xpose.msra.mxu0 0
  %1390 = vmatprep.subr.bf16.mxu0 0
  %1391 = vmatpush1.bf16.xpose.msra.mxu0 0
  %1392 = vmatprep.subr.bf16.mxu0 0
  %1393 = vmatpush1.bf16.xpose.msra.mxu0 0
  %1394 = vmatprep.subr.bf16.mxu0 0
  %1395 = vmatpush1.bf16.xpose.msra.mxu0 0
  %1396 = vmatprep.subr.bf16.mxu0 0
  %1397 = vmatpush1.bf16.xpose.msra.mxu0 0
  %1398 = vmatprep.mubr.bf16.mxu0 0
  %1399 = vmatmul.mubr.bf16.gmra.mrb[0].mxu0 %v1361
  %v1400 = vpop.f32.mrb[0].mxu0
  %v1401 = vadd.f32 0.0, %v1400
  %v1402 = vpop.f32.mrb[0].mxu0
  %v1403 = vpop.f32.mrb[0].mxu0
  %v1404 = vpop.f32.mrb[0].mxu0
  %1405 = vdwg.mxu0
  %v1406 = vmul.f32 %v1351, 0.25
  %v1407 = vmul.f32 %v1401, 0.25
  %v1408 = vadd.f32 %v1406, %v145
  %v1409 = vadd.f32 %v1407, %v149
  %v1410 = vsel %vm325, %v1408, -inf
  %1411 = vmax.xlane.f32.xlu0 %v1410
  %v1412 = vpop.xlane.xlu0 %1411
  %v1413 = vsel %vm325, %v1409, -inf
  %1414 = vmax.xlane.f32.xlu0 %v1413
  %v1415 = vpop.xlane.xlu0 %1414
  %v1416 = vsub.f32 %v1408, %v1412
  %v1417 = vsub.f32 %v1409, %v1415
  %v1418 = vmul.f32 %v1416, 1.442695
  %v1419 = vpow.pop %v1418
  %v1420 = vmul.f32 %v1417, 1.442695
  %v1421 = vpow.pop %v1420
  %v1422 = vsel %vm325, %v1419, 0.0
  %1423 = vadd.xlane.f32.xlu0 %v1422
  %v1424 = vpop.xlane.xlu0 %1423
  %v1425 = vsel %vm325, %v1421, 0.0
  %1426 = vadd.xlane.f32.xlu0 %v1425
  %v1427 = vpop.xlane.xlu0 %1426
  %v1428 = vrcp.pop %v1424
  %v1429 = vmul.f32 %v1419, %v1428
  %v1430 = vrcp.pop %v1427
  %v1431 = vmul.f32 %v1421, %v1430
  %v1432 = vpack.c.bf16 %v1429, %v1429
  %v1433 = vpack.c.bf16 %v1431, %v1431
  %1434 = vrot.lane.b32.xlu0 %v1082, 48
  %v1435 = vpop.permute.xlu0 %1434
  %v1437 = vsel %vm325, %v1432, 0
  %v1440 = vsel %vm355, %v1435, 0
  %1442 = vmatprep.subr.bf16.mxu0 0
  %1443 = vmatpush1.bf16.msra.mxu0 %v1440
  %1444 = vmatprep.subr.bf16.mxu0 0
  %1445 = vmatpush1.bf16.msra.mxu0 0
  %1446 = vmatprep.subr.bf16.mxu0 0
  %1447 = vmatpush1.bf16.msra.mxu0 0
  %1448 = vmatprep.subr.bf16.mxu0 0
  %1449 = vmatpush1.bf16.msra.mxu0 0
  %1450 = vmatprep.subr.bf16.mxu0 0
  %1451 = vmatpush1.bf16.msra.mxu0 0
  %1452 = vmatprep.subr.bf16.mxu0 0
  %1453 = vmatpush1.bf16.msra.mxu0 0
  %1454 = vmatprep.subr.bf16.mxu0 0
  %1455 = vmatpush1.bf16.msra.mxu0 0
  %1456 = vmatprep.subr.bf16.mxu0 0
  %1457 = vmatpush1.bf16.msra.mxu0 0
  %1458 = vmatprep.subr.bf16.mxu0 0
  %1459 = vmatpush1.bf16.msra.mxu0 0
  %1460 = vmatprep.subr.bf16.mxu0 0
  %1461 = vmatpush1.bf16.msra.mxu0 0
  %1462 = vmatprep.subr.bf16.mxu0 0
  %1463 = vmatpush1.bf16.msra.mxu0 0
  %1464 = vmatprep.subr.bf16.mxu0 0
  %1465 = vmatpush1.bf16.msra.mxu0 0
  %1466 = vmatprep.subr.bf16.mxu0 0
  %1467 = vmatpush1.bf16.msra.mxu0 0
  %1468 = vmatprep.subr.bf16.mxu0 0
  %1469 = vmatpush1.bf16.msra.mxu0 0
  %1470 = vmatprep.subr.bf16.mxu0 0
  %1471 = vmatpush1.bf16.msra.mxu0 0
  %1472 = vmatprep.subr.bf16.mxu0 0
  %1473 = vmatpush1.bf16.msra.mxu0 0
  %1474 = vmatprep.mubr.bf16.mxu0 0
  %1475 = vmatmul.mubr.bf16.gmra.mrb[0].mxu0 %v1437
  %v1476 = vpop.f32.mrb[0].mxu0
  %v1477 = vadd.f32 0.0, %v1476
  %v1478 = vpop.f32.mrb[0].mxu0
  %v1479 = vpop.f32.mrb[0].mxu0
  %v1480 = vpop.f32.mrb[0].mxu0
  %1481 = vdwg.mxu0
  %1482 = vrot.lane.b32.xlu0 %v1083, 48
  %v1483 = vpop.permute.xlu0 %1482
  %v1485 = vsel %vm325, %v1433, 0
  %v1488 = vsel %vm355, %v1483, 0
  %1490 = vmatprep.subr.bf16.mxu0 0
  %1491 = vmatpush1.bf16.msra.mxu0 %v1488
  %1492 = vmatprep.subr.bf16.mxu0 0
  %1493 = vmatpush1.bf16.msra.mxu0 0
  %1494 = vmatprep.subr.bf16.mxu0 0
  %1495 = vmatpush1.bf16.msra.mxu0 0
  %1496 = vmatprep.subr.bf16.mxu0 0
  %1497 = vmatpush1.bf16.msra.mxu0 0
  %1498 = vmatprep.subr.bf16.mxu0 0
  %1499 = vmatpush1.bf16.msra.mxu0 0
  %1500 = vmatprep.subr.bf16.mxu0 0
  %1501 = vmatpush1.bf16.msra.mxu0 0
  %1502 = vmatprep.subr.bf16.mxu0 0
  %1503 = vmatpush1.bf16.msra.mxu0 0
  %1504 = vmatprep.subr.bf16.mxu0 0
  %1505 = vmatpush1.bf16.msra.mxu0 0
  %1506 = vmatprep.subr.bf16.mxu0 0
  %1507 = vmatpush1.bf16.msra.mxu0 0
  %1508 = vmatprep.subr.bf16.mxu0 0
  %1509 = vmatpush1.bf16.msra.mxu0 0
  %1510 = vmatprep.subr.bf16.mxu0 0
  %1511 = vmatpush1.bf16.msra.mxu0 0
  %1512 = vmatprep.subr.bf16.mxu0 0
  %1513 = vmatpush1.bf16.msra.mxu0 0
  %1514 = vmatprep.subr.bf16.mxu0 0
  %1515 = vmatpush1.bf16.msra.mxu0 0
  %1516 = vmatprep.subr.bf16.mxu0 0
  %1517 = vmatpush1.bf16.msra.mxu0 0
  %1518 = vmatprep.subr.bf16.mxu0 0
  %1519 = vmatpush1.bf16.msra.mxu0 0
  %1520 = vmatprep.subr.bf16.mxu0 0
  %1521 = vmatpush1.bf16.msra.mxu0 0
  %1522 = vmatprep.mubr.bf16.mxu0 0
  %1523 = vmatmul.mubr.bf16.gmra.mrb[0].mxu0 %v1485
  %v1524 = vpop.f32.mrb[0].mxu0
  %v1525 = vadd.f32 0.0, %v1524
  %v1526 = vpop.f32.mrb[0].mxu0
  %v1527 = vpop.f32.mrb[0].mxu0
  %v1528 = vpop.f32.mrb[0].mxu0
  %1529 = vdwg.mxu0
  %1532 = vrot.lane.b32.xlu0 %v1477, 16
  %v1533 = vpop.permute.xlu0 %1532
  %1534 = vrot.lane.b32.xlu0 %v1525, 16
  %v1535 = vpop.permute.xlu0 %1534
  %v1538 = vsel %vm225, %v1253, %v1533
  %v1539 = vsel %vm225, %v1301, %v1535
  %v1540 = vpack.c.bf16 %v1539, %v1538
  %s1541 = scalar_lea.vmem %s6, 16
  %v1542 = vld [vmem:[%s1541] sm:$0xf]
  %v1543 = vld [vmem:[%s1541 + $0x4] sm:$0xf]
  %v1544 = vld [vmem:[%s1541 + $0x8] sm:$0xf]
  %v1545 = vld [vmem:[%s1541 + $0xc] sm:$0xf]
  %s1546 = scalar_lea.vmem %s7, 1
  %v1547 = vld [vmem:[%s1546] sm:$0x1]
  %v1549 = vlaneseq
  %v1550 = vshrl.u32 %v1549, 7
  %v1551 = vsub.s32 0, %v1550
  %v1552 = vrot.slane %v1547, %v1551
  %v1558 = vunpack.c.l.b16 %v1542
  %v1559 = vunpack.c.l.b16 %v1543
  %v1560 = vunpack.c.l.b16 %v1544
  %v1561 = vunpack.c.l.b16 %v1545
  %v1562 = vpack.c.b16 %v1559, %v1558
  %v1563 = vpack.c.b16 %v1561, %v1560
  %v1567 = vsel %vm72, %v1540, 0
  %1569 = vmatprep.subr.bf16.mxu0 0
  %1570 = vmatpush1.bf16.msra.mxu0 %v1562
  %1571 = vmatprep.subr.bf16.mxu0 0
  %1572 = vmatpush1.bf16.msra.mxu0 %v1563
  %1573 = vmatprep.subr.bf16.mxu0 0
  %1574 = vmatpush1.bf16.msra.mxu0 0
  %1575 = vmatprep.subr.bf16.mxu0 0
  %1576 = vmatpush1.bf16.msra.mxu0 0
  %1577 = vmatprep.subr.bf16.mxu0 0
  %1578 = vmatpush1.bf16.msra.mxu0 0
  %1579 = vmatprep.subr.bf16.mxu0 0
  %1580 = vmatpush1.bf16.msra.mxu0 0
  %1581 = vmatprep.subr.bf16.mxu0 0
  %1582 = vmatpush1.bf16.msra.mxu0 0
  %1583 = vmatprep.subr.bf16.mxu0 0
  %1584 = vmatpush1.bf16.msra.mxu0 0
  %1585 = vmatprep.subr.bf16.mxu0 0
  %1586 = vmatpush1.bf16.msra.mxu0 0
  %1587 = vmatprep.subr.bf16.mxu0 0
  %1588 = vmatpush1.bf16.msra.mxu0 0
  %1589 = vmatprep.subr.bf16.mxu0 0
  %1590 = vmatpush1.bf16.msra.mxu0 0
  %1591 = vmatprep.subr.bf16.mxu0 0
  %1592 = vmatpush1.bf16.msra.mxu0 0
  %1593 = vmatprep.subr.bf16.mxu0 0
  %1594 = vmatpush1.bf16.msra.mxu0 0
  %1595 = vmatprep.subr.bf16.mxu0 0
  %1596 = vmatpush1.bf16.msra.mxu0 0
  %1597 = vmatprep.subr.bf16.mxu0 0
  %1598 = vmatpush1.bf16.msra.mxu0 0
  %1599 = vmatprep.subr.bf16.mxu0 0
  %1600 = vmatpush1.bf16.msra.mxu0 0
  %1601 = vmatprep.mubr.bf16.mxu0 0
  %1602 = vmatmul.mubr.bf16.gmra.mrb[0].mxu0 %v1567
  %v1603 = vpop.f32.mrb[0].mxu0
  %v1604 = vadd.f32 %v1552, %v1603
  %v1605 = vpop.f32.mrb[0].mxu0
  %v1606 = vpop.f32.mrb[0].mxu0
  %v1607 = vadd.f32 %v1552, %v1606
  %v1608 = vpop.f32.mrb[0].mxu0
  %1609 = vdwg.mxu0
  %v1610 = vadd.f32 %v1604, %v1010
  %v1611 = vadd.f32 %v1607, %v1011
  %s1612 = scalar_lea.vmem %s8, 1
  %v1613 = vld [vmem:[%s1612] sm:$0x1]
  %s1614 = scalar_lea.vmem %s9, 1
  %v1615 = vld [vmem:[%s1614] sm:$0x1]
  %v1616 = vsel %vm72, %v1610, 0.0
  %1617 = vadd.xlane.f32.xlu0 %v1616
  %v1618 = vpop.xlane.xlu0 %1617
  %v1619 = vsel %vm72, %v1611, 0.0
  %1620 = vadd.xlane.f32.xlu0 %v1619
  %v1621 = vpop.xlane.xlu0 %1620
  %v1622 = vmul.f32 %v1618, %v79
  %v1623 = vmul.f32 %v1621, %v79
  %v1624 = vsub.f32 %v1610, %v1622
  %v1625 = vsub.f32 %v1611, %v1623
  %v1626 = vmul.f32 %v1624, %v1624
  %v1627 = vmul.f32 %v1625, %v1625
  %v1628 = vsel %vm72, %v1626, 0.0
  %1629 = vadd.xlane.f32.xlu0 %v1628
  %v1630 = vpop.xlane.xlu0 %1629
  %v1631 = vsel %vm72, %v1627, 0.0
  %1632 = vadd.xlane.f32.xlu0 %v1631
  %v1633 = vpop.xlane.xlu0 %1632
  %v1634 = vmul.f32 %v1630, %v79
  %v1635 = vmul.f32 %v1633, %v79
  %v1636 = vadd.f32 %v1634, 1e-12
  %v1637 = vadd.f32 %v1635, 1e-12
  %v1638 = vrsqrt.pop %v1636
  %v1639 = vrsqrt.pop %v1637
  %v1640 = vmul.f32 %v1624, %v1638
  %v1641 = vmul.f32 %v1625, %v1639
  %v1643 = vlaneseq
  %v1644 = vshrl.u32 %v1643, 7
  %v1645 = vsub.s32 0, %v1644
  %v1646 = vrot.slane %v1613, %v1645
  %v1648 = vmul.f32 %v1640, %v1646
  %v1649 = vmul.f32 %v1641, %v1646
  %v1651 = vlaneseq
  %v1652 = vshrl.u32 %v1651, 7
  %v1653 = vsub.s32 0, %v1652
  %v1654 = vrot.slane %v1615, %v1653
  %v1656 = vadd.f32 %v1648, %v1654
  %v1657 = vadd.f32 %v1649, %v1654
  %v1658 = vpack.c.bf16 %v1657, %v1656
  %s1659 = scalar_lea.vmem %s10, 16
  %v1660 = vld [vmem:[%s1659] sm:$0xf]
  %v1661 = vld [vmem:[%s1659 + $0x4] sm:$0xf]
  %v1662 = vld [vmem:[%s1659 + $0x8] sm:$0xf]
  %v1663 = vld [vmem:[%s1659 + $0xc] sm:$0xf]
  %s1664 = scalar_lea.vmem %s11, 1
  %v1665 = vld [vmem:[%s1664] sm:$0x1]
  %v1667 = vlaneseq
  %v1668 = vshrl.u32 %v1667, 7
  %v1669 = vsub.s32 0, %v1668
  %v1670 = vrot.slane %v1665, %v1669
  %v1676 = vunpack.c.l.b16 %v1660
  %v1677 = vunpack.c.l.b16 %v1661
  %v1678 = vunpack.c.l.b16 %v1662
  %v1679 = vunpack.c.l.b16 %v1663
  %v1680 = vpack.c.b16 %v1677, %v1676
  %v1681 = vpack.c.b16 %v1679, %v1678
  %v1685 = vsel %vm72, %v1658, 0
  %1687 = vmatprep.subr.bf16.mxu0 0
  %1688 = vmatpush1.bf16.msra.mxu0 %v1680
  %1689 = vmatprep.subr.bf16.mxu0 0
  %1690 = vmatpush1.bf16.msra.mxu0 %v1681
  %1691 = vmatprep.subr.bf16.mxu0 0
  %1692 = vmatpush1.bf16.msra.mxu0 0
  %1693 = vmatprep.subr.bf16.mxu0 0
  %1694 = vmatpush1.bf16.msra.mxu0 0
  %1695 = vmatprep.subr.bf16.mxu0 0
  %1696 = vmatpush1.bf16.msra.mxu0 0
  %1697 = vmatprep.subr.bf16.mxu0 0
  %1698 = vmatpush1.bf16.msra.mxu0 0
  %1699 = vmatprep.subr.bf16.mxu0 0
  %1700 = vmatpush1.bf16.msra.mxu0 0
  %1701 = vmatprep.subr.bf16.mxu0 0
  %1702 = vmatpush1.bf16.msra.mxu0 0
  %1703 = vmatprep.subr.bf16.mxu0 0
  %1704 = vmatpush1.bf16.msra.mxu0 0
  %1705 = vmatprep.subr.bf16.mxu0 0
  %1706 = vmatpush1.bf16.msra.mxu0 0
  %1707 = vmatprep.subr.bf16.mxu0 0
  %1708 = vmatpush1.bf16.msra.mxu0 0
  %1709 = vmatprep.subr.bf16.mxu0 0
  %1710 = vmatpush1.bf16.msra.mxu0 0
  %1711 = vmatprep.subr.bf16.mxu0 0
  %1712 = vmatpush1.bf16.msra.mxu0 0
  %1713 = vmatprep.subr.bf16.mxu0 0
  %1714 = vmatpush1.bf16.msra.mxu0 0
  %1715 = vmatprep.subr.bf16.mxu0 0
  %1716 = vmatpush1.bf16.msra.mxu0 0
  %1717 = vmatprep.subr.bf16.mxu0 0
  %1718 = vmatpush1.bf16.msra.mxu0 0
  %1719 = vmatprep.mubr.bf16.mxu0 0
  %1720 = vmatmul.mubr.bf16.gmra.mrb[0].mxu0 %v1685
  %v1721 = vpop.f32.mrb[0].mxu0
  %v1722 = vadd.f32 %v1670, %v1721
  %v1723 = vpop.f32.mrb[0].mxu0
  %v1724 = vpop.f32.mrb[0].mxu0
  %v1725 = vadd.f32 %v1670, %v1724
  %v1726 = vpop.f32.mrb[0].mxu0
  %1727 = vdwg.mxu0
  %v1728 = vmul.f32 %v1722, 0.5
  %v1729 = vmul.f32 %v1725, 0.5
  %v1730 = vmul.f32 %v1722, 0.044715
  %v1731 = vmul.f32 %v1725, 0.044715
  %v1732 = vmul.f32 %v1730, %v1722
  %v1733 = vmul.f32 %v1731, %v1725
  %v1734 = vmul.f32 %v1732, %v1722
  %v1735 = vmul.f32 %v1733, %v1725
  %v1736 = vadd.f32 %v1722, %v1734
  %v1737 = vadd.f32 %v1725, %v1735
  %v1738 = vmul.f32 %v1736, 0.7978846
  %v1739 = vmul.f32 %v1737, 0.7978846
  %v1740 = vtanh.pop %v1738
  %v1741 = vtanh.pop %v1739
  %v1742 = vadd.f32 %v1740, 1.0
  %v1743 = vadd.f32 %v1741, 1.0
  %v1744 = vmul.f32 %v1728, %v1742
  %v1745 = vmul.f32 %v1729, %v1743
  %v1746 = vpack.c.bf16 %v1745, %v1744
  %s1747 = scalar_lea.vmem %s12, 32
  %v1748 = vld [vmem:[%s1747] sm:$0xf]
  %v1749 = vld [vmem:[%s1747 + $0x4] sm:$0xf]
  %v1750 = vld [vmem:[%s1747 + $0x8] sm:$0xf]
  %v1751 = vld [vmem:[%s1747 + $0xc] sm:$0xf]
  %v1752 = vld [vmem:[%s1747 + $0x10] sm:$0xf]
  %v1753 = vld [vmem:[%s1747 + $0x14] sm:$0xf]
  %v1754 = vld [vmem:[%s1747 + $0x18] sm:$0xf]
  %v1755 = vld [vmem:[%s1747 + $0x1c] sm:$0xf]
  %s1756 = scalar_lea.vmem %s13, 1
  %v1757 = vld [vmem:[%s1756] sm:$0x1]
  %v1759 = vlaneseq
  %v1760 = vshrl.u32 %v1759, 7
  %v1761 = vsub.s32 0, %v1760
  %v1762 = vrot.slane %v1757, %v1761
  %v1772 = vunpack.c.l.b16 %v1748
  %v1773 = vunpack.c.l.b16 %v1749
  %v1774 = vunpack.c.l.b16 %v1750
  %v1775 = vunpack.c.l.b16 %v1751
  %v1776 = vunpack.c.l.b16 %v1752
  %v1777 = vunpack.c.l.b16 %v1753
  %v1778 = vunpack.c.l.b16 %v1754
  %v1779 = vunpack.c.l.b16 %v1755
  %v1780 = vpack.c.b16 %v1773, %v1772
  %v1781 = vpack.c.b16 %v1775, %v1774
  %v1782 = vpack.c.b16 %v1777, %v1776
  %v1783 = vpack.c.b16 %v1779, %v1778
  %v1789 = vsel %vm921, %v1746, 0
  %1791 = vmatprep.subr.bf16.mxu0 0
  %1792 = vmatpush1.bf16.msra.mxu0 %v1780
  %1793 = vmatprep.subr.bf16.mxu0 0
  %1794 = vmatpush1.bf16.msra.mxu0 %v1781
  %1795 = vmatprep.subr.bf16.mxu0 0
  %1796 = vmatpush1.bf16.msra.mxu0 %v1782
  %1797 = vmatprep.subr.bf16.mxu0 0
  %1798 = vmatpush1.bf16.msra.mxu0 %v1783
  %1799 = vmatprep.subr.bf16.mxu0 0
  %1800 = vmatpush1.bf16.msra.mxu0 0
  %1801 = vmatprep.subr.bf16.mxu0 0
  %1802 = vmatpush1.bf16.msra.mxu0 0
  %1803 = vmatprep.subr.bf16.mxu0 0
  %1804 = vmatpush1.bf16.msra.mxu0 0
  %1805 = vmatprep.subr.bf16.mxu0 0
  %1806 = vmatpush1.bf16.msra.mxu0 0
  %1807 = vmatprep.subr.bf16.mxu0 0
  %1808 = vmatpush1.bf16.msra.mxu0 0
  %1809 = vmatprep.subr.bf16.mxu0 0
  %1810 = vmatpush1.bf16.msra.mxu0 0
  %1811 = vmatprep.subr.bf16.mxu0 0
  %1812 = vmatpush1.bf16.msra.mxu0 0
  %1813 = vmatprep.subr.bf16.mxu0 0
  %1814 = vmatpush1.bf16.msra.mxu0 0
  %1815 = vmatprep.subr.bf16.mxu0 0
  %1816 = vmatpush1.bf16.msra.mxu0 0
  %1817 = vmatprep.subr.bf16.mxu0 0
  %1818 = vmatpush1.bf16.msra.mxu0 0
  %1819 = vmatprep.subr.bf16.mxu0 0
  %1820 = vmatpush1.bf16.msra.mxu0 0
  %1821 = vmatprep.subr.bf16.mxu0 0
  %1822 = vmatpush1.bf16.msra.mxu0 0
  %1823 = vmatprep.mubr.bf16.mxu0 0
  %1824 = vmatmul.mubr.bf16.gmra.mrb[0].mxu0 %v1789
  %v1825 = vpop.f32.mrb[0].mxu0
  %v1826 = vadd.f32 %v1762, %v1825
  %v1827 = vpop.f32.mrb[0].mxu0
  %v1828 = vpop.f32.mrb[0].mxu0
  %v1829 = vadd.f32 %v1762, %v1828
  %v1830 = vpop.f32.mrb[0].mxu0
  %1831 = vdwg.mxu0
  %v1832 = vadd.f32 %v1826, %v1656
  %v1833 = vadd.f32 %v1829, %v1657
  %s1834 = scalar_lea.vmem %s14, 1
  %v1835 = vld [vmem:[%s1834] sm:$0x1]
  %s1836 = scalar_lea.vmem %s15, 1
  %v1837 = vld [vmem:[%s1836] sm:$0x1]
  %v1838 = vsel %vm72, %v1832, 0.0
  %1839 = vadd.xlane.f32.xlu0 %v1838
  %v1840 = vpop.xlane.xlu0 %1839
  %v1841 = vsel %vm72, %v1833, 0.0
  %1842 = vadd.xlane.f32.xlu0 %v1841
  %v1843 = vpop.xlane.xlu0 %1842
  %v1844 = vmul.f32 %v1840, %v79
  %v1845 = vmul.f32 %v1843, %v79
  %v1846 = vsub.f32 %v1832, %v1844
  %v1847 = vsub.f32 %v1833, %v1845
  %v1848 = vmul.f32 %v1846, %v1846
  %v1849 = vmul.f32 %v1847, %v1847
  %v1850 = vsel %vm72, %v1848, 0.0
  %1851 = vadd.xlane.f32.xlu0 %v1850
  %v1852 = vpop.xlane.xlu0 %1851
  %v1853 = vsel %vm72, %v1849, 0.0
  %1854 = vadd.xlane.f32.xlu0 %v1853
  %v1855 = vpop.xlane.xlu0 %1854
  %v1856 = vmul.f32 %v1852, %v79
  %v1857 = vmul.f32 %v1855, %v79
  %v1858 = vadd.f32 %v1856, 1e-12
  %v1859 = vadd.f32 %v1857, 1e-12
  %v1860 = vrsqrt.pop %v1858
  %v1861 = vrsqrt.pop %v1859
  %v1862 = vmul.f32 %v1846, %v1860
  %v1863 = vmul.f32 %v1847, %v1861
  %v1865 = vlaneseq
  %v1866 = vshrl.u32 %v1865, 7
  %v1867 = vsub.s32 0, %v1866
  %v1868 = vrot.slane %v1835, %v1867
  %v1870 = vmul.f32 %v1862, %v1868
  %v1871 = vmul.f32 %v1863, %v1868
  %v1873 = vlaneseq
  %v1874 = vshrl.u32 %v1873, 7
  %v1875 = vsub.s32 0, %v1874
  %v1876 = vrot.slane %v1837, %v1875
  %v1878 = vadd.f32 %v1870, %v1876
  %v1879 = vadd.f32 %v1871, %v1876
  %v1880 = vlaneseq
  %v1881 = vshrl.u32 %v1880, 7
  %v1882 = vlaneseq
  %v1883 = vand.u32 %v1882, 127
  %v1884 = vmul.u32 %v1881, 8
  %vm1885 = vcmp.eq.s32.totalorder %v1883, %v1884
  %v1886 = vsel %vm1885, 1, 0
  %v1887 = vcvt.s32.f32 %v1886
  %v1889 = vsel %vm225, %v1887, 0
  %1891 = vmatprep.subr.mxu0 0.0
  %1892 = vmatpush1.msra.mxu0 %v1878
  %1893 = vmatprep.subr.mxu0 0.0
  %1894 = vmatpush1.msra.mxu0 %v1879
  %1895 = vmatprep.subr.mxu0 0.0
  %1896 = vmatpush1.msra.mxu0 0.0
  %1897 = vmatprep.subr.mxu0 0.0
  %1898 = vmatpush1.msra.mxu0 0.0
  %1899 = vmatprep.subr.mxu0 0.0
  %1900 = vmatpush1.msra.mxu0 0.0
  %1901 = vmatprep.subr.mxu0 0.0
  %1902 = vmatpush1.msra.mxu0 0.0
  %1903 = vmatprep.subr.mxu0 0.0
  %1904 = vmatpush1.msra.mxu0 0.0
  %1905 = vmatprep.subr.mxu0 0.0
  %1906 = vmatpush1.msra.mxu0 0.0
  %1907 = vmatprep.subr.mxu0 0.0
  %1908 = vmatpush1.msra.mxu0 0.0
  %1909 = vmatprep.subr.mxu0 0.0
  %1910 = vmatpush1.msra.mxu0 0.0
  %1911 = vmatprep.subr.mxu0 0.0
  %1912 = vmatpush1.msra.mxu0 0.0
  %1913 = vmatprep.subr.mxu0 0.0
  %1914 = vmatpush1.msra.mxu0 0.0
  %1915 = vmatprep.subr.mxu0 0.0
  %1916 = vmatpush1.msra.mxu0 0.0
  %1917 = vmatprep.subr.mxu0 0.0
  %1918 = vmatpush1.msra.mxu0 0.0
  %1919 = vmatprep.subr.mxu0 0.0
  %1920 = vmatpush1.msra.mxu0 0.0
  %1921 = vmatprep.subr.mxu0 0.0
  %1922 = vmatpush1.msra.mxu0 0.0
  %1923 = vmatprep.subr.mxu0 0.0
  %1924 = vmatpush1.msra.mxu0 0.0
  %1925 = vmatprep.subr.mxu0 0.0
  %1926 = vmatpush1.msra.mxu0 0.0
  %1927 = vmatprep.subr.mxu0 0.0
  %1928 = vmatpush1.msra.mxu0 0.0
  %1929 = vmatprep.subr.mxu0 0.0
  %1930 = vmatpush1.msra.mxu0 0.0
  %1931 = vmatprep.subr.mxu0 0.0
  %1932 = vmatpush1.msra.mxu0 0.0
  %1933 = vmatprep.subr.mxu0 0.0
  %1934 = vmatpush1.msra.mxu0 0.0
  %1935 = vmatprep.subr.mxu0 0.0
  %1936 = vmatpush1.msra.mxu0 0.0
  %1937 = vmatprep.subr.mxu0 0.0
  %1938 = vmatpush1.msra.mxu0 0.0
  %1939 = vmatprep.subr.mxu0 0.0
  %1940 = vmatpush1.msra.mxu0 0.0
  %1941 = vmatprep.subr.mxu0 0.0
  %1942 = vmatpush1.msra.mxu0 0.0
  %1943 = vmatprep.subr.mxu0 0.0
  %1944 = vmatpush1.msra.mxu0 0.0
  %1945 = vmatprep.subr.mxu0 0.0
  %1946 = vmatpush1.msra.mxu0 0.0
  %1947 = vmatprep.subr.mxu0 0.0
  %1948 = vmatpush1.msra.mxu0 0.0
  %1949 = vmatprep.subr.mxu0 0.0
  %1950 = vmatpush1.msra.mxu0 0.0
  %1951 = vmatprep.subr.mxu0 0.0
  %1952 = vmatpush1.msra.mxu0 0.0
  %1953 = vmatprep.subr.mxu0 0.0
  %1954 = vmatpush1.msra.mxu0 0.0
  %1955 = vmatprep.mubr.f32.mxu0 0.0
  %1956 = vmatmul.mubr.f32.gmra.mrb[0].mxu0 %v1889
  %v1957 = vpop.f32.mrb[0].mxu0
  %v1958 = vadd.f32 0.0, %v1957
  %v1959 = vpop.f32.mrb[0].mxu0
  %1960 = vdwg.mxu0
  %v1961 = vpack.c.bf16 %v1958, %v1958
  %v1962 = vld [vmem:[%s16] sm:$0xf]
  %v1963 = vld [vmem:[%s16 + $0x4] sm:$0xf]
  %v1964 = vld [vmem:[%s16 + $0x8] sm:$0xf]
  %v1965 = vld [vmem:[%s16 + $0xc] sm:$0xf]
  %v1966 = vld [vmem:[%s17] sm:$0x1]
  %v1968 = vlaneseq
  %v1969 = vshrl.u32 %v1968, 7
  %v1970 = vsub.s32 0, %v1969
  %v1971 = vrot.slane %v1966, %v1970
  %v1977 = vunpack.c.l.b16 %v1962
  %v1978 = vunpack.c.l.b16 %v1963
  %v1979 = vunpack.c.l.b16 %v1964
  %v1980 = vunpack.c.l.b16 %v1965
  %v1981 = vpack.c.b16 %v1978, %v1977
  %v1982 = vpack.c.b16 %v1980, %v1979
  %v1986 = vsel %vm72, %v1961, 0
  %1988 = vmatprep.subr.bf16.mxu0 0
  %1989 = vmatpush1.bf16.msra.mxu0 %v1981
  %1990 = vmatprep.subr.bf16.mxu0 0
  %1991 = vmatpush1.bf16.msra.mxu0 %v1982
  %1992 = vmatprep.subr.bf16.mxu0 0
  %1993 = vmatpush1.bf16.msra.mxu0 0
  %1994 = vmatprep.subr.bf16.mxu0 0
  %1995 = vmatpush1.bf16.msra.mxu0 0
  %1996 = vmatprep.subr.bf16.mxu0 0
  %1997 = vmatpush1.bf16.msra.mxu0 0
  %1998 = vmatprep.subr.bf16.mxu0 0
  %1999 = vmatpush1.bf16.msra.mxu0 0
  %2000 = vmatprep.subr.bf16.mxu0 0
  %2001 = vmatpush1.bf16.msra.mxu0 0
  %2002 = vmatprep.subr.bf16.mxu0 0
  %2003 = vmatpush1.bf16.msra.mxu0 0
  %2004 = vmatprep.subr.bf16.mxu0 0
  %2005 = vmatpush1.bf16.msra.mxu0 0
  %2006 = vmatprep.subr.bf16.mxu0 0
  %2007 = vmatpush1.bf16.msra.mxu0 0
  %2008 = vmatprep.subr.bf16.mxu0 0
  %2009 = vmatpush1.bf16.msra.mxu0 0
  %2010 = vmatprep.subr.bf16.mxu0 0
  %2011 = vmatpush1.bf16.msra.mxu0 0
  %2012 = vmatprep.subr.bf16.mxu0 0
  %2013 = vmatpush1.bf16.msra.mxu0 0
  %2014 = vmatprep.subr.bf16.mxu0 0
  %2015 = vmatpush1.bf16.msra.mxu0 0
  %2016 = vmatprep.subr.bf16.mxu0 0
  %2017 = vmatpush1.bf16.msra.mxu0 0
  %2018 = vmatprep.subr.bf16.mxu0 0
  %2019 = vmatpush1.bf16.msra.mxu0 0
  %2020 = vmatprep.mubr.bf16.mxu0 0
  %2021 = vmatmul.mubr.bf16.gmra.mrb[0].mxu0 %v1986
  %v2022 = vpop.f32.mrb[0].mxu0
  %v2023 = vadd.f32 %v1971, %v2022
  %v2024 = vpop.f32.mrb[0].mxu0
  %v2025 = vpop.f32.mrb[0].mxu0
  %v2026 = vpop.f32.mrb[0].mxu0
  %2027 = vdwg.mxu0
  %v2028 = vtanh.pop %v2023
  %v2029 = vld [vmem:[%s18] sm:$0x1]
  %v2031 = vlaneseq
  %v2032 = vshrl.u32 %v2031, 7
  %v2033 = vsub.s32 0, %v2032
  %v2034 = vrot.slane %v2029, %v2033
  %v2036 = vmul.f32 %v2028, %v2034
  %v2037 = vsel %vm72, %v2036, 0.0
  %2038 = vadd.xlane.f32.xlu0 %v2037
  %v2039 = vpop.xlane.xlu0 %2038
  %v2040 = vld [vmem:[#allocation2] sm:$0x1]
  %v2042 = vlaneseq
  %v2043 = vshrl.u32 %v2042, 7
  %v2044 = vsub.s32 0, %v2043
  %v2045 = vrot.slane %v2040, %v2044
  %v2047 = vadd.f32 %v2039, %v2045
  %2049 = vset.pattern.permute.xlu0 0
  %2050 = vperm.xlu0 %2049, %v2047
  %v2051 = vpop.permute.xlu0 %2050
  %2053 = vst [vmem:[%s20] sm:$0xff] %v2051
  // Predicated region
  $region82: #{forward.1} parent=0 // pred_check
    _
  $region83: #{forward.1} parent=0 // pred_check_branch
    %2055 = sbr.rel (0) target = $region85
  $region84: #{forward.1} parent=0 // pred_region
    _
  $region85: #{forward.1} parent=0 // pred_fallthru
    _
  // Predicated region
  $region86: #{forward.1} parent=0 // pred_check
    _
  $region87: #{forward.1} parent=0 // pred_check_branch
    %2057 = sbr.rel (0) target = $region89
  $region88: #{forward.1} parent=0 // pred_region
    _
  $region89: #{forward.1} parent=0 // pred_fallthru
    _

</llo_original>
